<compile_context>
chip_gen: v7x
topology: tpu7x:2x2x1
jax: 0.10.0
libtpu: 0.0.40
codegen_flags: <defaults>
</compile_context>

<pallas_src>
import functools

import jax
import jax.numpy as jnp
from jax import lax
from jax.experimental import pallas as pl
from jax.experimental.pallas import tpu as pltpu

# ---- small synthetic KoBERT-style config (real kobert-base: H=768, L=12, A=12) ----
HIDDEN = 128
N_LAYERS = 2
N_HEADS = 2
HEAD_DIM = HIDDEN // N_HEADS
FFN = 256
VOCAB = 64
MAX_POS = 32
TYPE_VOCAB = 2
EPS = 1e-12

_VMEM_LIMIT = 32 * 1024 * 1024   # explicit scoped-VMEM limit (safe on v5e/v6e/v7x)


def _pick_tile(dim, candidates):
    for c in candidates:
        if dim % c == 0:
            return c
    return dim


def _layernorm_f32(y, gamma, beta, eps):
    mean = jnp.mean(y, axis=-1, keepdims=True)
    var = jnp.mean(jnp.square(y - mean), axis=-1, keepdims=True)
    return (y - mean) * lax.rsqrt(var + eps) * gamma + beta


def _gelu_exact(x):
    # exact (erf) GELU, matching HF BERT.  TODO(synk): on v5e consider tanh-approx
    # GELU if erf becomes the binding EUP slot at real FFN sizes.
    return 0.5 * x * (1.0 + lax.erf(x * 0.7071067811865476))


# ---------------------------- Pallas kernels ----------------------------

def _matmul_kernel(x_ref, w_ref, b_ref, o_ref, acc_ref, *, activation):
    """Tiled matmul with K-axis accumulator; bias + optional activation epilogue."""
    @pl.when(pl.program_id(2) == 0)
    def _():
        acc_ref[...] = jnp.zeros_like(acc_ref)

    acc_ref[...] += jnp.dot(x_ref[...], w_ref[...],
                            preferred_element_type=jnp.float32)

    @pl.when(pl.program_id(2) == pl.num_programs(2) - 1)
    def _():
        y = acc_ref[...] + b_ref[...]
        if activation == "gelu":
            y = _gelu_exact(y)
        elif activation == "tanh":
            y = jnp.tanh(y)
        o_ref[...] = y.astype(o_ref.dtype)


def pallas_linear(x, w, b, activation="none", out_dtype=jnp.bfloat16):
    M, K = x.shape
    N = w.shape[1]
    tm = _pick_tile(M, (512, 256, 128, 64, 32, 16, 8))
    tn = _pick_tile(N, (512, 384, 256, 128))
    tk = _pick_tile(K, (512, 256, 128))
    grid = (M // tm, N // tn, K // tk)
    cost = pl.CostEstimate(
        flops=2 * M * N * K,
        transcendentals=(M * N if activation != "none" else 0),
        bytes_accessed=(M * K * x.dtype.itemsize + K * N * w.dtype.itemsize
                        + M * N * jnp.dtype(out_dtype).itemsize + N * 4))
    return pl.pallas_call(
        functools.partial(_matmul_kernel, activation=activation),
        out_shape=jax.ShapeDtypeStruct((M, N), out_dtype),
        grid=grid,
        in_specs=[pl.BlockSpec((tm, tk), lambda i, j, k: (i, k)),
                  pl.BlockSpec((tk, tn), lambda i, j, k: (k, j)),
                  pl.BlockSpec((1, tn), lambda i, j, k: (0, j))],
        out_specs=pl.BlockSpec((tm, tn), lambda i, j, k: (i, j)),
        scratch_shapes=[pltpu.VMEM((tm, tn), jnp.float32)],
        compiler_params=pltpu.CompilerParams(
            dimension_semantics=("parallel", "parallel", "arbitrary"),
            vmem_limit_bytes=_VMEM_LIMIT),
        cost_estimate=cost,
    )(x, w, b.reshape(1, N))


def _ln_kernel(x_ref, g_ref, b_ref, o_ref, *, eps):
    o_ref[...] = _layernorm_f32(x_ref[...].astype(jnp.float32),
                                g_ref[...], b_ref[...], eps).astype(o_ref.dtype)


def pallas_layernorm(x, gamma, beta, eps=EPS, out_dtype=jnp.bfloat16):
    """Residual-free LayerNorm (used for the embedding LN)."""
    M, H = x.shape
    tm = _pick_tile(M, (512, 256, 128, 64, 32, 16, 8))
    return pl.pallas_call(
        functools.partial(_ln_kernel, eps=eps),
        out_shape=jax.ShapeDtypeStruct((M, H), out_dtype),
        grid=(M // tm,),
        in_specs=[pl.BlockSpec((tm, H), lambda i: (i, 0)),
                  pl.BlockSpec((1, H), lambda i: (0, 0)),
                  pl.BlockSpec((1, H), lambda i: (0, 0))],
        out_specs=pl.BlockSpec((tm, H), lambda i: (i, 0)),
        compiler_params=pltpu.CompilerParams(
            dimension_semantics=("parallel",), vmem_limit_bytes=_VMEM_LIMIT),
    )(x, gamma.reshape(1, H), beta.reshape(1, H))


def _attn_block_kernel(x_ref, wqkv_ref, bqkv_ref, m_ref, wo_ref, bo_ref,
                       g_ref, be_ref, o_ref, *,
                       scale, n_heads, head_dim, hidden, eps):
    """Fused per-batch-element transformer attention block:

        LayerNorm( MHA(x @ Wqkv + bqkv) @ Wo + bo + x )

    All intermediates (packed QKV, attention scores, per-head context) live only
    in VMEM/vregs.  The per-head context is folded into Wo as a per-head
    row-slice matmul accumulation, so no 64-lane concat is materialized and the
    only HBM store is the lane-dense (S, HIDDEN) output.
    """
    x = x_ref[0]                                              # (S, H) bf16
    m = m_ref[0]                                              # (1, S) f32 additive key mask

    # QKV projection on the MXU, f32 accumulation, bf16 for the attention matmuls.
    qkv = (jnp.dot(x, wqkv_ref[...], preferred_element_type=jnp.float32)
           + bqkv_ref[...]).astype(x.dtype)                   # (S, 3H)

    y = jnp.zeros((x.shape[0], hidden), jnp.float32)          # Wo-projected context acc
    for h in range(n_heads):                                  # static unroll over heads
        q = qkv[:, h * head_dim:(h + 1) * head_dim]
        k = qkv[:, hidden + h * head_dim: hidden + (h + 1) * head_dim]
        v = qkv[:, 2 * hidden + h * head_dim: 2 * hidden + (h + 1) * head_dim]
        # contract last dims of Q and K directly (no materialized K^T / XLU transpose)
        s = lax.dot_general(q, k, (((1,), (1,)), ((), ())),
                            preferred_element_type=jnp.float32) * scale
        s = s + m                                             # broadcast over query rows
        s = s - jnp.max(s, axis=-1, keepdims=True)
        p = jnp.exp(s)
        # approx reciprocal runs on the EUP (free slot); tiny relative error vs
        # an exact divide -- acceptable for retrieval embeddings.
        p = p * pl.reciprocal(jnp.sum(p, axis=-1, keepdims=True), approx=True)
        ctx = jnp.dot(p.astype(v.dtype), v,
                      preferred_element_type=jnp.float32)     # (S, head_dim)
        # fold head context straight into Wo: sum_h ctx_h @ Wo[h*dh:(h+1)*dh, :]
        y = y + jnp.dot(ctx.astype(wo_ref.dtype),
                        wo_ref[h * head_dim:(h + 1) * head_dim, :],
                        preferred_element_type=jnp.float32)

    y = y + bo_ref[...] + x.astype(jnp.float32)               # residual = input x
    o_ref[0] = _layernorm_f32(y, g_ref[...], be_ref[...], eps).astype(o_ref.dtype)


def pallas_attention_block(x, wqkv, bqkv, mask, wo, bo, gamma, beta, eps=EPS,
                           out_dtype=jnp.bfloat16):
    """x: (B, S, H) bf16; mask: (B, 1, S) additive f32. Returns (B, S, H)."""
    B, S, H = x.shape
    threeH = wqkv.shape[1]
    scale = 1.0 / float(HEAD_DIM) ** 0.5
    # TODO(synk): at real KoBERT sizes mark the constant weight specs with
    # pipeline_mode=pl.Buffered(1) to avoid double-buffering ~5 MiB of weights.
    return pl.pallas_call(
        functools.partial(_attn_block_kernel, scale=scale, n_heads=N_HEADS,
                          head_dim=HEAD_DIM, hidden=H, eps=eps),
        out_shape=jax.ShapeDtypeStruct((B, S, H), out_dtype),
        grid=(B,),
        in_specs=[pl.BlockSpec((1, S, H), lambda b: (b, 0, 0)),
                  pl.BlockSpec((H, threeH), lambda b: (0, 0)),
                  pl.BlockSpec((1, threeH), lambda b: (0, 0)),
                  pl.BlockSpec((1, 1, S), lambda b: (b, 0, 0)),
                  pl.BlockSpec((H, H), lambda b: (0, 0)),
                  pl.BlockSpec((1, H), lambda b: (0, 0)),
                  pl.BlockSpec((1, H), lambda b: (0, 0)),
                  pl.BlockSpec((1, H), lambda b: (0, 0))],
        out_specs=pl.BlockSpec((1, S, H), lambda b: (b, 0, 0)),
        compiler_params=pltpu.CompilerParams(
            dimension_semantics=("parallel",), vmem_limit_bytes=_VMEM_LIMIT),
    )(x, wqkv, bqkv.reshape(1, threeH), mask, wo, bo.reshape(1, H),
      gamma.reshape(1, H), beta.reshape(1, H))


def _ffn_res_ln_kernel(x_ref, w1_ref, b1_ref, w2_ref, b2_ref, g_ref, be_ref,
                       o_ref, *, eps, f_chunk):
    """Fused: LayerNorm(GELU(x @ w1 + b1) @ w2 + b2 + x).

    The FFN dimension is processed in f_chunk-wide column blocks so the live
    f32 intermediate stays small; x_ref doubles as the residual (no separate
    residual DMA stream)."""
    x = x_ref[...]                                            # (tm, H) bf16
    F = w1_ref.shape[1]
    acc = jnp.zeros((x.shape[0], w2_ref.shape[1]), jnp.float32)
    for c in range(F // f_chunk):                             # static unroll
        lo, hi = c * f_chunk, (c + 1) * f_chunk
        t = jnp.dot(x, w1_ref[:, lo:hi], preferred_element_type=jnp.float32)
        t = _gelu_exact(t + b1_ref[:, lo:hi])
        acc = acc + jnp.dot(t.astype(w2_ref.dtype), w2_ref[lo:hi, :],
                            preferred_element_type=jnp.float32)
    y = acc + b2_ref[...] + x.astype(jnp.float32)             # residual = input x
    o_ref[...] = _layernorm_f32(y, g_ref[...], be_ref[...], eps).astype(o_ref.dtype)


def pallas_ffn_res_ln(x, w1, b1, w2, b2, gamma, beta, eps=EPS,
                      out_dtype=jnp.bfloat16):
    M, H = x.shape
    F = w1.shape[1]
    tm = _pick_tile(M, (256, 128, 64, 32, 16, 8))
    f_chunk = 512 if F % 512 == 0 else F
    return pl.pallas_call(
        functools.partial(_ffn_res_ln_kernel, eps=eps, f_chunk=f_chunk),
        out_shape=jax.ShapeDtypeStruct((M, H), out_dtype),
        grid=(M // tm,),
        in_specs=[pl.BlockSpec((tm, H), lambda i: (i, 0)),
                  pl.BlockSpec((H, F), lambda i: (0, 0)),
                  pl.BlockSpec((1, F), lambda i: (0, 0)),
                  pl.BlockSpec((F, H), lambda i: (0, 0)),
                  pl.BlockSpec((1, H), lambda i: (0, 0)),
                  pl.BlockSpec((1, H), lambda i: (0, 0)),
                  pl.BlockSpec((1, H), lambda i: (0, 0))],
        out_specs=pl.BlockSpec((tm, H), lambda i: (i, 0)),
        compiler_params=pltpu.CompilerParams(
            dimension_semantics=("parallel",), vmem_limit_bytes=_VMEM_LIMIT),
    )(x, w1, b1.reshape(1, F), w2, b2.reshape(1, H),
      gamma.reshape(1, H), beta.reshape(1, H))


# ---------------------------- BERT encoder (forward only) ----------------------------

def init_bert_params(key):
    keys = jax.random.split(key, 4 + N_LAYERS)

    def nrm(k, shape, dtype=jnp.bfloat16):
        return (0.02 * jax.random.normal(k, shape, dtype=jnp.float32)).astype(dtype)

    params = {
        "word_emb": nrm(keys[0], (VOCAB, HIDDEN), jnp.float32),
        "pos_emb": nrm(keys[1], (MAX_POS, HIDDEN), jnp.float32),
        "type_emb": nrm(keys[2], (TYPE_VOCAB, HIDDEN), jnp.float32),
        "emb_ln_g": jnp.ones((HIDDEN,), jnp.float32),
        "emb_ln_b": jnp.zeros((HIDDEN,), jnp.float32),
        "pooler_w": nrm(keys[3], (HIDDEN, HIDDEN)),
        "pooler_b": jnp.zeros((HIDDEN,), jnp.float32),
        "layers": [],
    }
    for i in range(N_LAYERS):
        lk = jax.random.split(keys[4 + i], 6)
        wq = nrm(lk[0], (HIDDEN, HIDDEN))
        wk = nrm(lk[1], (HIDDEN, HIDDEN))
        wv = nrm(lk[2], (HIDDEN, HIDDEN))
        params["layers"].append({
            # fused Q|K|V projection weight: (H, 3H)
            "wqkv": jnp.concatenate([wq, wk, wv], axis=1),
            "bqkv": jnp.zeros((3 * HIDDEN,), jnp.float32),
            "wo": nrm(lk[3], (HIDDEN, HIDDEN)), "bo": jnp.zeros((HIDDEN,), jnp.float32),
            "ln1_g": jnp.ones((HIDDEN,), jnp.float32), "ln1_b": jnp.zeros((HIDDEN,), jnp.float32),
            "w1": nrm(lk[4], (HIDDEN, FFN)), "b1": jnp.zeros((FFN,), jnp.float32),
            "w2": nrm(lk[5], (FFN, HIDDEN)), "b2": jnp.zeros((HIDDEN,), jnp.float32),
            "ln2_g": jnp.ones((HIDDEN,), jnp.float32), "ln2_b": jnp.zeros((HIDDEN,), jnp.float32),
        })
    return params


def bert_encode(params, input_ids, attention_mask):
    """Returns pooler_output: tanh(W_pool @ hidden[:, 0] + b_pool)."""
    B, S = input_ids.shape
    assert S <= MAX_POS

    # embeddings (gather + add is glue); LN input carried in bf16, stats in f32
    emb = (jnp.take(params["word_emb"], input_ids, axis=0)
           + params["pos_emb"][None, :S, :]
           + params["type_emb"][0][None, None, :])       # token_type_ids == 0 (HF default)
    h = pallas_layernorm(emb.reshape(B * S, HIDDEN).astype(jnp.bfloat16),
                         params["emb_ln_g"], params["emb_ln_b"])     # (B*S, H) bf16

    # HF-style additive mask: 0 where attended, -10000 where masked; 2D per batch
    ext_mask = ((1.0 - attention_mask.astype(jnp.float32)) * -10000.0).reshape(B, 1, S)

    for lp in params["layers"]:
        # --- attention block: QKV + MHA + Wo + residual + LN in ONE kernel ---
        h = pallas_attention_block(h.reshape(B, S, HIDDEN),
                                   lp["wqkv"], lp["bqkv"], ext_mask,
                                   lp["wo"], lp["bo"], lp["ln1_g"], lp["ln1_b"]
                                   ).reshape(B * S, HIDDEN)
        # --- feed forward: FFN1 + GELU + FFN2 + residual + LN in ONE kernel ---
        h = pallas_ffn_res_ln(h, lp["w1"], lp["b1"], lp["w2"], lp["b2"],
                              lp["ln2_g"], lp["ln2_b"])

    # pooler: dense + tanh on the [CLS] token (rows padded to the 8-row sublane)
    # TODO(synk): gather CLS rows inside the pooler kernel via an Element index_map
    # to avoid the padded HBM materialization entirely.
    cls = h.reshape(B, S, HIDDEN)[:, 0, :]
    pad = (-B) % 8
    cls_pad = jnp.pad(cls, ((0, pad), (0, 0)))
    pooled = pallas_linear(cls_pad, params["pooler_w"], params["pooler_b"],
                           activation="tanh", out_dtype=jnp.float32)
    return pooled[:B]


_bert_encode_jit = jax.jit(bert_encode)


class KobertBiEncoder:
    """Two independent BERT-style encoders (passage / query), pooler_output forward."""

    def __init__(self, key):
        kp, kq = jax.random.split(key)
        # TODO(synk): real module loads pretrained 'skt/kobert-base-v1' weights;
        # here params are deterministic synthetic initializations.
        self.passage_params = init_bert_params(kp)
        self.query_params = init_bert_params(kq)

    def forward(self, input_ids, attention_mask, type: str):
        if type == "passage":
            return _bert_encode_jit(self.passage_params, input_ids, attention_mask)
        else:
            return _bert_encode_jit(self.query_params, input_ids, attention_mask)

    # checkpoint()/load() are file I/O with no Pallas equivalent (omitted).


if __name__ == "__main__":
    key = jax.random.PRNGKey(0)
    k_model, k_ids = jax.random.split(key)

    B, S = 2, 8
    input_ids = jax.random.randint(k_ids, (B, S), 0, VOCAB, dtype=jnp.int32)
    attention_mask = jnp.array([[1, 1, 1, 1, 1, 1, 1, 1],
                                [1, 1, 1, 1, 1, 1, 0, 0]], dtype=jnp.int32)

    model = KobertBiEncoder(k_model)
    p_out = model.forward(input_ids, attention_mask, type="passage")
    q_out = model.forward(input_ids, attention_mask, type="query")
    jax.block_until_ready((p_out, q_out))

    assert p_out.shape == (B, HIDDEN) and q_out.shape == (B, HIDDEN)
    assert bool(jnp.all(jnp.isfinite(p_out))) and bool(jnp.all(jnp.isfinite(q_out)))
    print("KERNEL_OK")
</pallas_src>

<mosaic_0001>
module attributes {stable_mosaic.version = 11 : i64} {
  func.func @_ln_kernel(%arg0: i32, %arg1: memref<16x128xbf16, #tpu.memory_space<vmem>>, %arg2: memref<1x128xf32, #tpu.memory_space<vmem>>, %arg3: memref<1x128xf32, #tpu.memory_space<vmem>>, %arg4: memref<16x128xbf16, #tpu.memory_space<vmem>>) attributes {dimension_semantics = [#tpu.dimension_semantics<parallel>], iteration_bounds = array<i64: 1>, scalar_prefetch = 0 : i64, scratch_operands = 0 : i64, tpu.core_type = #tpu.core_type<tc>, window_params = [{transform_indices = @transform_0, window_bounds = array<i64: 16, 128>}, {pipeline_mode = #tpu.pipeline_mode<synchronous>, transform_indices = @transform_1, window_bounds = array<i64: 1, 128>}, {pipeline_mode = #tpu.pipeline_mode<synchronous>, transform_indices = @transform_2, window_bounds = array<i64: 1, 128>}, {transform_indices = @transform_3, window_bounds = array<i64: 16, 128>}]} {
    %c0 = arith.constant 0 : index
    %c0_0 = arith.constant 0 : index
    %0 = vector.load %arg1[%c0, %c0_0] : memref<16x128xbf16, #tpu.memory_space<vmem>>, vector<16x128xbf16>
    %1 = arith.extf %0 : vector<16x128xbf16> to vector<16x128xf32>
    %c0_1 = arith.constant 0 : index
    %c0_2 = arith.constant 0 : index
    %2 = vector.load %arg2[%c0_1, %c0_2] : memref<1x128xf32, #tpu.memory_space<vmem>>, vector<1x128xf32>
    %c0_3 = arith.constant 0 : index
    %c0_4 = arith.constant 0 : index
    %3 = vector.load %arg3[%c0_3, %c0_4] : memref<1x128xf32, #tpu.memory_space<vmem>>, vector<1x128xf32>
    %cst = arith.constant dense<0.000000e+00> : vector<16xf32>
    %4 = vector.multi_reduction <add>, %1, %cst [1] : vector<16x128xf32> to vector<16xf32>
    %5 = vector.shape_cast %4 : vector<16xf32> to vector<16x1xf32>
    %cst_5 = arith.constant 1.280000e+02 : f32
    %6 = vector.broadcast %cst_5 : f32 to vector<16x1xf32>
    %7 = arith.divf %5, %6 : vector<16x1xf32>
    %8 = vector.broadcast %7 : vector<16x1xf32> to vector<16x128xf32>
    %9 = arith.subf %1, %8 : vector<16x128xf32>
    %10 = arith.mulf %9, %9 : vector<16x128xf32>
    %cst_6 = arith.constant dense<0.000000e+00> : vector<16xf32>
    %11 = vector.multi_reduction <add>, %10, %cst_6 [1] : vector<16x128xf32> to vector<16xf32>
    %12 = vector.shape_cast %11 : vector<16xf32> to vector<16x1xf32>
    %cst_7 = arith.constant 1.280000e+02 : f32
    %13 = vector.broadcast %cst_7 : f32 to vector<16x1xf32>
    %14 = arith.divf %12, %13 : vector<16x1xf32>
    %15 = vector.broadcast %7 : vector<16x1xf32> to vector<16x128xf32>
    %16 = arith.subf %1, %15 : vector<16x128xf32>
    %cst_8 = arith.constant 9.99999996E-13 : f32
    %17 = vector.broadcast %cst_8 : f32 to vector<16x1xf32>
    %18 = arith.addf %14, %17 : vector<16x1xf32>
    %19 = math.rsqrt %18 : vector<16x1xf32>
    %20 = vector.broadcast %19 : vector<16x1xf32> to vector<16x128xf32>
    %21 = arith.mulf %16, %20 : vector<16x128xf32>
    %22 = vector.broadcast %2 : vector<1x128xf32> to vector<16x128xf32>
    %23 = arith.mulf %21, %22 : vector<16x128xf32>
    %24 = vector.broadcast %3 : vector<1x128xf32> to vector<16x128xf32>
    %25 = arith.addf %23, %24 : vector<16x128xf32>
    %26 = arith.truncf %25 : vector<16x128xf32> to vector<16x128xbf16>
    %c0_9 = arith.constant 0 : index
    %c0_10 = arith.constant 0 : index
    %27 = vector.load %arg4[%c0_9, %c0_10] : memref<16x128xbf16, #tpu.memory_space<vmem>>, vector<16x128xbf16>
    tpu.vector_store %arg4[%c0_9, %c0_10], %26 {strides = array<i32>} : memref<16x128xbf16, #tpu.memory_space<vmem>>, vector<16x128xbf16>,
    return
  }
  func.func @transform_0(%arg0: i32) -> (i32, i32) {
    %c0_i32 = arith.constant 0 : i32
    %c0_i32_0 = arith.constant 0 : i32
    return %arg0, %c0_i32 : i32, i32
  }
  func.func @transform_1(%arg0: i32) -> (i32, i32) {
    %c0_i32 = arith.constant 0 : i32
    %c0_i32_0 = arith.constant 0 : i32
    %c0_i32_1 = arith.constant 0 : i32
    return %c0_i32, %c0_i32_0 : i32, i32
  }
  func.func @transform_2(%arg0: i32) -> (i32, i32) {
    %c0_i32 = arith.constant 0 : i32
    %c0_i32_0 = arith.constant 0 : i32
    %c0_i32_1 = arith.constant 0 : i32
    return %c0_i32, %c0_i32_0 : i32, i32
  }
  func.func @transform_3(%arg0: i32) -> (i32, i32) {
    %c0_i32 = arith.constant 0 : i32
    %c0_i32_0 = arith.constant 0 : i32
    return %arg0, %c0_i32 : i32, i32
  }
}

module attributes {stable_mosaic.version = 11 : i64} {
  func.func @_ffn_res_ln_kernel(%arg0: i32, %arg1: memref<16x128xbf16, #tpu.memory_space<vmem>>, %arg2: memref<128x256xbf16, #tpu.memory_space<vmem>>, %arg3: memref<1x256xf32, #tpu.memory_space<vmem>>, %arg4: memref<256x128xbf16, #tpu.memory_space<vmem>>, %arg5: memref<1x128xf32, #tpu.memory_space<vmem>>, %arg6: memref<1x128xf32, #tpu.memory_space<vmem>>, %arg7: memref<1x128xf32, #tpu.memory_space<vmem>>, %arg8: memref<16x128xbf16, #tpu.memory_space<vmem>>) attributes {dimension_semantics = [#tpu.dimension_semantics<parallel>], iteration_bounds = array<i64: 1>, scalar_prefetch = 0 : i64, scratch_operands = 0 : i64, tpu.core_type = #tpu.core_type<tc>, window_params = [{transform_indices = @transform_0, window_bounds = array<i64: 16, 128>}, {pipeline_mode = #tpu.pipeline_mode<synchronous>, transform_indices = @transform_1, window_bounds = array<i64: 128, 256>}, {pipeline_mode = #tpu.pipeline_mode<synchronous>, transform_indices = @transform_2, window_bounds = array<i64: 1, 256>}, {pipeline_mode = #tpu.pipeline_mode<synchronous>, transform_indices = @transform_3, window_bounds = array<i64: 256, 128>}, {pipeline_mode = #tpu.pipeline_mode<synchronous>, transform_indices = @transform_4, window_bounds = array<i64: 1, 128>}, {pipeline_mode = #tpu.pipeline_mode<synchronous>, transform_indices = @transform_5, window_bounds = array<i64: 1, 128>}, {pipeline_mode = #tpu.pipeline_mode<synchronous>, transform_indices = @transform_6, window_bounds = array<i64: 1, 128>}, {transform_indices = @transform_7, window_bounds = array<i64: 16, 128>}]} {
    %c0 = arith.constant 0 : index
    %c0_0 = arith.constant 0 : index
    %0 = vector.load %arg1[%c0, %c0_0] : memref<16x128xbf16, #tpu.memory_space<vmem>>, vector<16x128xbf16>
    %cst = arith.constant 0.000000e+00 : f32
    %1 = vector.broadcast %cst : f32 to vector<16x128xf32>
    %c0_1 = arith.constant 0 : index
    %c0_2 = arith.constant 0 : index
    %2 = vector.load %arg2[%c0_1, %c0_2] : memref<128x256xbf16, #tpu.memory_space<vmem>>, vector<128x256xbf16>
    %cst_3 = arith.constant dense<0.000000e+00> : vector<16x256xf32>
    %3 = tpu.matmul %0, %2, %cst_3 {dimension_numbers = #tpu.dot_dimension_numbers<[1], [0], [0], [1], [0, 0, 1, 1], [], []>} : vector<16x128xbf16>, vector<128x256xbf16>, vector<16x256xf32> -> vector<16x256xf32>
    %c0_4 = arith.constant 0 : index
    %c0_5 = arith.constant 0 : index
    %4 = vector.load %arg3[%c0_4, %c0_5] : memref<1x256xf32, #tpu.memory_space<vmem>>, vector<1x256xf32>
    %5 = vector.broadcast %4 : vector<1x256xf32> to vector<16x256xf32>
    %6 = arith.addf %3, %5 : vector<16x256xf32>
    %cst_6 = arith.constant 5.000000e-01 : f32
    %7 = vector.broadcast %cst_6 : f32 to vector<16x256xf32>
    %8 = arith.mulf %7, %6 : vector<16x256xf32>
    %cst_7 = arith.constant 0.707106769 : f32
    %9 = vector.broadcast %cst_7 : f32 to vector<16x256xf32>
    %10 = arith.mulf %6, %9 : vector<16x256xf32>
    %11 = math.erf %10 : vector<16x256xf32>
    %cst_8 = arith.constant 1.000000e+00 : f32
    %12 = vector.broadcast %cst_8 : f32 to vector<16x256xf32>
    %13 = arith.addf %12, %11 : vector<16x256xf32>
    %14 = arith.mulf %8, %13 : vector<16x256xf32>
    %15 = arith.truncf %14 : vector<16x256xf32> to vector<16x256xbf16>
    %c0_9 = arith.constant 0 : index
    %c0_10 = arith.constant 0 : index
    %16 = vector.load %arg4[%c0_9, %c0_10] : memref<256x128xbf16, #tpu.memory_space<vmem>>, vector<256x128xbf16>
    %cst_11 = arith.constant dense<0.000000e+00> : vector<16x128xf32>
    %17 = tpu.matmul %15, %16, %cst_11 {dimension_numbers = #tpu.dot_dimension_numbers<[1], [0], [0], [1], [0, 0, 1, 1], [], []>} : vector<16x256xbf16>, vector<256x128xbf16>, vector<16x128xf32> -> vector<16x128xf32>
    %18 = arith.addf %1, %17 : vector<16x128xf32>
    %c0_12 = arith.constant 0 : index
    %c0_13 = arith.constant 0 : index
    %19 = vector.load %arg5[%c0_12, %c0_13] : memref<1x128xf32, #tpu.memory_space<vmem>>, vector<1x128xf32>
    %20 = vector.broadcast %19 : vector<1x128xf32> to vector<16x128xf32>
    %21 = arith.addf %18, %20 : vector<16x128xf32>
    %22 = arith.extf %0 : vector<16x128xbf16> to vector<16x128xf32>
    %23 = arith.addf %21, %22 : vector<16x128xf32>
    %c0_14 = arith.constant 0 : index
    %c0_15 = arith.constant 0 : index
    %24 = vector.load %arg6[%c0_14, %c0_15] : memref<1x128xf32, #tpu.memory_space<vmem>>, vector<1x128xf32>
    %c0_16 = arith.constant 0 : index
    %c0_17 = arith.constant 0 : index
    %25 = vector.load %arg7[%c0_16, %c0_17] : memref<1x128xf32, #tpu.memory_space<vmem>>, vector<1x128xf32>
    %cst_18 = arith.constant dense<0.000000e+00> : vector<16xf32>
    %26 = vector.multi_reduction <add>, %23, %cst_18 [1] : vector<16x128xf32> to vector<16xf32>
    %27 = vector.shape_cast %26 : vector<16xf32> to vector<16x1xf32>
    %cst_19 = arith.constant 1.280000e+02 : f32
    %28 = vector.broadcast %cst_19 : f32 to vector<16x1xf32>
    %29 = arith.divf %27, %28 : vector<16x1xf32>
    %30 = vector.broadcast %29 : vector<16x1xf32> to vector<16x128xf32>
    %31 = arith.subf %23, %30 : vector<16x128xf32>
    %32 = arith.mulf %31, %31 : vector<16x128xf32>
    %cst_20 = arith.constant dense<0.000000e+00> : vector<16xf32>
    %33 = vector.multi_reduction <add>, %32, %cst_20 [1] : vector<16x128xf32> to vector<16xf32>
    %34 = vector.shape_cast %33 : vector<16xf32> to vector<16x1xf32>
    %cst_21 = arith.constant 1.280000e+02 : f32
    %35 = vector.broadcast %cst_21 : f32 to vector<16x1xf32>
    %36 = arith.divf %34, %35 : vector<16x1xf32>
    %37 = vector.broadcast %29 : vector<16x1xf32> to vector<16x128xf32>
    %38 = arith.subf %23, %37 : vector<16x128xf32>
    %cst_22 = arith.constant 9.99999996E-13 : f32
    %39 = vector.broadcast %cst_22 : f32 to vector<16x1xf32>
    %40 = arith.addf %36, %39 : vector<16x1xf32>
    %41 = math.rsqrt %40 : vector<16x1xf32>
    %42 = vector.broadcast %41 : vector<16x1xf32> to vector<16x128xf32>
    %43 = arith.mulf %38, %42 : vector<16x128xf32>
    %44 = vector.broadcast %24 : vector<1x128xf32> to vector<16x128xf32>
    %45 = arith.mulf %43, %44 : vector<16x128xf32>
    %46 = vector.broadcast %25 : vector<1x128xf32> to vector<16x128xf32>
    %47 = arith.addf %45, %46 : vector<16x128xf32>
    %48 = arith.truncf %47 : vector<16x128xf32> to vector<16x128xbf16>
    %c0_23 = arith.constant 0 : index
    %c0_24 = arith.constant 0 : index
    %49 = vector.load %arg8[%c0_23, %c0_24] : memref<16x128xbf16, #tpu.memory_space<vmem>>, vector<16x128xbf16>
    tpu.vector_store %arg8[%c0_23, %c0_24], %48 {strides = array<i32>} : memref<16x128xbf16, #tpu.memory_space<vmem>>, vector<16x128xbf16>,
    return
  }
  func.func @transform_0(%arg0: i32) -> (i32, i32) {
    %c0_i32 = arith.constant 0 : i32
    %c0_i32_0 = arith.constant 0 : i32
    return %arg0, %c0_i32 : i32, i32
  }
  func.func @transform_1(%arg0: i32) -> (i32, i32) {
    %c0_i32 = arith.constant 0 : i32
    %c0_i32_0 = arith.constant 0 : i32
    %c0_i32_1 = arith.constant 0 : i32
    return %c0_i32, %c0_i32_0 : i32, i32
  }
  func.func @transform_2(%arg0: i32) -> (i32, i32) {
    %c0_i32 = arith.constant 0 : i32
    %c0_i32_0 = arith.constant 0 : i32
    %c0_i32_1 = arith.constant 0 : i32
    return %c0_i32, %c0_i32_0 : i32, i32
  }
  func.func @transform_3(%arg0: i32) -> (i32, i32) {
    %c0_i32 = arith.constant 0 : i32
    %c0_i32_0 = arith.constant 0 : i32
    %c0_i32_1 = arith.constant 0 : i32
    return %c0_i32, %c0_i32_0 : i32, i32
  }
  func.func @transform_4(%arg0: i32) -> (i32, i32) {
    %c0_i32 = arith.constant 0 : i32
    %c0_i32_0 = arith.constant 0 : i32
    %c0_i32_1 = arith.constant 0 : i32
    return %c0_i32, %c0_i32_0 : i32, i32
  }
  func.func @transform_5(%arg0: i32) -> (i32, i32) {
    %c0_i32 = arith.constant 0 : i32
    %c0_i32_0 = arith.constant 0 : i32
    %c0_i32_1 = arith.constant 0 : i32
    return %c0_i32, %c0_i32_0 : i32, i32
  }
  func.func @transform_6(%arg0: i32) -> (i32, i32) {
    %c0_i32 = arith.constant 0 : i32
    %c0_i32_0 = arith.constant 0 : i32
    %c0_i32_1 = arith.constant 0 : i32
    return %c0_i32, %c0_i32_0 : i32, i32
  }
  func.func @transform_7(%arg0: i32) -> (i32, i32) {
    %c0_i32 = arith.constant 0 : i32
    %c0_i32_0 = arith.constant 0 : i32
    return %arg0, %c0_i32 : i32, i32
  }
}

module attributes {stable_mosaic.version = 11 : i64} {
  func.func @_attn_block_kernel(%arg0: i32, %arg1: memref<1x8x128xbf16, #tpu.memory_space<vmem>>, %arg2: memref<128x384xbf16, #tpu.memory_space<vmem>>, %arg3: memref<1x384xf32, #tpu.memory_space<vmem>>, %arg4: memref<1x1x8xf32, #tpu.memory_space<vmem>>, %arg5: memref<128x128xbf16, #tpu.memory_space<vmem>>, %arg6: memref<1x128xf32, #tpu.memory_space<vmem>>, %arg7: memref<1x128xf32, #tpu.memory_space<vmem>>, %arg8: memref<1x128xf32, #tpu.memory_space<vmem>>, %arg9: memref<1x8x128xbf16, #tpu.memory_space<vmem>>) attributes {dimension_semantics = [#tpu.dimension_semantics<parallel>], iteration_bounds = array<i64: 2>, scalar_prefetch = 0 : i64, scratch_operands = 0 : i64, tpu.core_type = #tpu.core_type<tc>, window_params = [{transform_indices = @transform_0, window_bounds = array<i64: 1, 8, 128>}, {pipeline_mode = #tpu.pipeline_mode<synchronous>, transform_indices = @transform_1, window_bounds = array<i64: 128, 384>}, {pipeline_mode = #tpu.pipeline_mode<synchronous>, transform_indices = @transform_2, window_bounds = array<i64: 1, 384>}, {transform_indices = @transform_3, window_bounds = array<i64: 1, 1, 8>}, {pipeline_mode = #tpu.pipeline_mode<synchronous>, transform_indices = @transform_4, window_bounds = array<i64: 128, 128>}, {pipeline_mode = #tpu.pipeline_mode<synchronous>, transform_indices = @transform_5, window_bounds = array<i64: 1, 128>}, {pipeline_mode = #tpu.pipeline_mode<synchronous>, transform_indices = @transform_6, window_bounds = array<i64: 1, 128>}, {pipeline_mode = #tpu.pipeline_mode<synchronous>, transform_indices = @transform_7, window_bounds = array<i64: 1, 128>}, {transform_indices = @transform_8, window_bounds = array<i64: 1, 8, 128>}]} {
    %c0 = arith.constant 0 : index
    %c0_0 = arith.constant 0 : index
    %c0_1 = arith.constant 0 : index
    %0 = vector.load %arg1[%c0, %c0_0, %c0_1] : memref<1x8x128xbf16, #tpu.memory_space<vmem>>, vector<1x8x128xbf16>
    %1 = vector.shape_cast %0 : vector<1x8x128xbf16> to vector<8x128xbf16>
    %c0_2 = arith.constant 0 : index
    %c0_3 = arith.constant 0 : index
    %c0_4 = arith.constant 0 : index
    %2 = vector.load %arg4[%c0_2, %c0_3, %c0_4] : memref<1x1x8xf32, #tpu.memory_space<vmem>>, vector<1x1x8xf32>
    %3 = vector.shape_cast %2 : vector<1x1x8xf32> to vector<1x8xf32>
    %c0_5 = arith.constant 0 : index
    %c0_6 = arith.constant 0 : index
    %4 = vector.load %arg2[%c0_5, %c0_6] : memref<128x384xbf16, #tpu.memory_space<vmem>>, vector<128x384xbf16>
    %cst = arith.constant dense<0.000000e+00> : vector<8x384xf32>
    %5 = tpu.matmul %1, %4, %cst {dimension_numbers = #tpu.dot_dimension_numbers<[1], [0], [0], [1], [0, 0, 1, 1], [], []>} : vector<8x128xbf16>, vector<128x384xbf16>, vector<8x384xf32> -> vector<8x384xf32>
    %c0_7 = arith.constant 0 : index
    %c0_8 = arith.constant 0 : index
    %6 = vector.load %arg3[%c0_7, %c0_8] : memref<1x384xf32, #tpu.memory_space<vmem>>, vector<1x384xf32>
    %7 = vector.broadcast %6 : vector<1x384xf32> to vector<8x384xf32>
    %8 = arith.addf %5, %7 : vector<8x384xf32>
    %9 = arith.truncf %8 : vector<8x384xf32> to vector<8x384xbf16>
    %cst_9 = arith.constant 0.000000e+00 : f32
    %10 = vector.broadcast %cst_9 : f32 to vector<8x128xf32>
    %11 = vector.extract_strided_slice %9 {offsets = [0, 0], sizes = [8, 64], strides = [1, 1]} : vector<8x384xbf16> to vector<8x64xbf16>
    %12 = vector.extract_strided_slice %9 {offsets = [0, 128], sizes = [8, 64], strides = [1, 1]} : vector<8x384xbf16> to vector<8x64xbf16>
    %13 = vector.extract_strided_slice %9 {offsets = [0, 256], sizes = [8, 64], strides = [1, 1]} : vector<8x384xbf16> to vector<8x64xbf16>
    %cst_10 = arith.constant dense<0.000000e+00> : vector<8x8xf32>
    %14 = tpu.matmul %11, %12, %cst_10 {dimension_numbers = #tpu.dot_dimension_numbers<[1], [1], [0], [0], [0, 0, 1, 0], [], []>} : vector<8x64xbf16>, vector<8x64xbf16>, vector<8x8xf32> -> vector<8x8xf32>
    %cst_11 = arith.constant 1.250000e-01 : f32
    %15 = vector.broadcast %cst_11 : f32 to vector<8x8xf32>
    %16 = arith.mulf %14, %15 : vector<8x8xf32>
    %17 = vector.broadcast %3 : vector<1x8xf32> to vector<8x8xf32>
    %18 = arith.addf %16, %17 : vector<8x8xf32>
    %cst_12 = arith.constant dense<0xFF800000> : vector<8xf32>
    %19 = vector.multi_reduction <maximumf>, %18, %cst_12 [1] : vector<8x8xf32> to vector<8xf32>
    %20 = vector.shape_cast %19 : vector<8xf32> to vector<8x1xf32>
    %21 = vector.broadcast %20 : vector<8x1xf32> to vector<8x8xf32>
    %22 = arith.subf %18, %21 : vector<8x8xf32>
    %23 = math.exp %22 : vector<8x8xf32>
    %cst_13 = arith.constant dense<0.000000e+00> : vector<8xf32>
    %24 = vector.multi_reduction <add>, %23, %cst_13 [1] : vector<8x8xf32> to vector<8xf32>
    %25 = vector.shape_cast %24 : vector<8xf32> to vector<8x1xf32>
    %26 = tpu.reciprocal %25 {approx = true} : vector<8x1xf32> -> vector<8x1xf32>
    %27 = vector.broadcast %26 : vector<8x1xf32> to vector<8x8xf32>
    %28 = arith.mulf %23, %27 : vector<8x8xf32>
    %29 = arith.truncf %28 : vector<8x8xf32> to vector<8x8xbf16>
    %cst_14 = arith.constant dense<0.000000e+00> : vector<8x64xf32>
    %30 = tpu.matmul %29, %13, %cst_14 {dimension_numbers = #tpu.dot_dimension_numbers<[1], [0], [0], [1], [0, 0, 1, 1], [], []>} : vector<8x8xbf16>, vector<8x64xbf16>, vector<8x64xf32> -> vector<8x64xf32>
    %31 = arith.truncf %30 : vector<8x64xf32> to vector<8x64xbf16>
    %c0_15 = arith.constant 0 : index
    %c0_16 = arith.constant 0 : index
    %32 = vector.load %arg5[%c0_15, %c0_16] : memref<128x128xbf16, #tpu.memory_space<vmem>>, vector<64x128xbf16>
    %cst_17 = arith.constant dense<0.000000e+00> : vector<8x128xf32>
    %33 = tpu.matmul %31, %32, %cst_17 {dimension_numbers = #tpu.dot_dimension_numbers<[1], [0], [0], [1], [0, 0, 1, 1], [], []>} : vector<8x64xbf16>, vector<64x128xbf16>, vector<8x128xf32> -> vector<8x128xf32>
    %34 = arith.addf %10, %33 : vector<8x128xf32>
    %35 = vector.extract_strided_slice %9 {offsets = [0, 64], sizes = [8, 64], strides = [1, 1]} : vector<8x384xbf16> to vector<8x64xbf16>
    %36 = vector.extract_strided_slice %9 {offsets = [0, 192], sizes = [8, 64], strides = [1, 1]} : vector<8x384xbf16> to vector<8x64xbf16>
    %37 = vector.extract_strided_slice %9 {offsets = [0, 320], sizes = [8, 64], strides = [1, 1]} : vector<8x384xbf16> to vector<8x64xbf16>
    %cst_18 = arith.constant dense<0.000000e+00> : vector<8x8xf32>
    %38 = tpu.matmul %35, %36, %cst_18 {dimension_numbers = #tpu.dot_dimension_numbers<[1], [1], [0], [0], [0, 0, 1, 0], [], []>} : vector<8x64xbf16>, vector<8x64xbf16>, vector<8x8xf32> -> vector<8x8xf32>
    %cst_19 = arith.constant 1.250000e-01 : f32
    %39 = vector.broadcast %cst_19 : f32 to vector<8x8xf32>
    %40 = arith.mulf %38, %39 : vector<8x8xf32>
    %41 = vector.broadcast %3 : vector<1x8xf32> to vector<8x8xf32>
    %42 = arith.addf %40, %41 : vector<8x8xf32>
    %cst_20 = arith.constant dense<0xFF800000> : vector<8xf32>
    %43 = vector.multi_reduction <maximumf>, %42, %cst_20 [1] : vector<8x8xf32> to vector<8xf32>
    %44 = vector.shape_cast %43 : vector<8xf32> to vector<8x1xf32>
    %45 = vector.broadcast %44 : vector<8x1xf32> to vector<8x8xf32>
    %46 = arith.subf %42, %45 : vector<8x8xf32>
    %47 = math.exp %46 : vector<8x8xf32>
    %cst_21 = arith.constant dense<0.000000e+00> : vector<8xf32>
    %48 = vector.multi_reduction <add>, %47, %cst_21 [1] : vector<8x8xf32> to vector<8xf32>
    %49 = vector.shape_cast %48 : vector<8xf32> to vector<8x1xf32>
    %50 = tpu.reciprocal %49 {approx = true} : vector<8x1xf32> -> vector<8x1xf32>
    %51 = vector.broadcast %50 : vector<8x1xf32> to vector<8x8xf32>
    %52 = arith.mulf %47, %51 : vector<8x8xf32>
    %53 = arith.truncf %52 : vector<8x8xf32> to vector<8x8xbf16>
    %cst_22 = arith.constant dense<0.000000e+00> : vector<8x64xf32>
    %54 = tpu.matmul %53, %37, %cst_22 {dimension_numbers = #tpu.dot_dimension_numbers<[1], [0], [0], [1], [0, 0, 1, 1], [], []>} : vector<8x8xbf16>, vector<8x64xbf16>, vector<8x64xf32> -> vector<8x64xf32>
    %55 = arith.truncf %54 : vector<8x64xf32> to vector<8x64xbf16>
    %c64 = arith.constant 64 : index
    %c0_23 = arith.constant 0 : index
    %56 = vector.load %arg5[%c64, %c0_23] : memref<128x128xbf16, #tpu.memory_space<vmem>>, vector<64x128xbf16>
    %cst_24 = arith.constant dense<0.000000e+00> : vector<8x128xf32>
    %57 = tpu.matmul %55, %56, %cst_24 {dimension_numbers = #tpu.dot_dimension_numbers<[1], [0], [0], [1], [0, 0, 1, 1], [], []>} : vector<8x64xbf16>, vector<64x128xbf16>, vector<8x128xf32> -> vector<8x128xf32>
    %58 = arith.addf %34, %57 : vector<8x128xf32>
    %c0_25 = arith.constant 0 : index
    %c0_26 = arith.constant 0 : index
    %59 = vector.load %arg6[%c0_25, %c0_26] : memref<1x128xf32, #tpu.memory_space<vmem>>, vector<1x128xf32>
    %60 = vector.broadcast %59 : vector<1x128xf32> to vector<8x128xf32>
    %61 = arith.addf %58, %60 : vector<8x128xf32>
    %62 = arith.extf %1 : vector<8x128xbf16> to vector<8x128xf32>
    %63 = arith.addf %61, %62 : vector<8x128xf32>
    %c0_27 = arith.constant 0 : index
    %c0_28 = arith.constant 0 : index
    %64 = vector.load %arg7[%c0_27, %c0_28] : memref<1x128xf32, #tpu.memory_space<vmem>>, vector<1x128xf32>
    %c0_29 = arith.constant 0 : index
    %c0_30 = arith.constant 0 : index
    %65 = vector.load %arg8[%c0_29, %c0_30] : memref<1x128xf32, #tpu.memory_space<vmem>>, vector<1x128xf32>
    %cst_31 = arith.constant dense<0.000000e+00> : vector<8xf32>
    %66 = vector.multi_reduction <add>, %63, %cst_31 [1] : vector<8x128xf32> to vector<8xf32>
    %67 = vector.shape_cast %66 : vector<8xf32> to vector<8x1xf32>
    %cst_32 = arith.constant 1.280000e+02 : f32
    %68 = vector.broadcast %cst_32 : f32 to vector<8x1xf32>
    %69 = arith.divf %67, %68 : vector<8x1xf32>
    %70 = vector.broadcast %69 : vector<8x1xf32> to vector<8x128xf32>
    %71 = arith.subf %63, %70 : vector<8x128xf32>
    %72 = arith.mulf %71, %71 : vector<8x128xf32>
    %cst_33 = arith.constant dense<0.000000e+00> : vector<8xf32>
    %73 = vector.multi_reduction <add>, %72, %cst_33 [1] : vector<8x128xf32> to vector<8xf32>
    %74 = vector.shape_cast %73 : vector<8xf32> to vector<8x1xf32>
    %cst_34 = arith.constant 1.280000e+02 : f32
    %75 = vector.broadcast %cst_34 : f32 to vector<8x1xf32>
    %76 = arith.divf %74, %75 : vector<8x1xf32>
    %77 = vector.broadcast %69 : vector<8x1xf32> to vector<8x128xf32>
    %78 = arith.subf %63, %77 : vector<8x128xf32>
    %cst_35 = arith.constant 9.99999996E-13 : f32
    %79 = vector.broadcast %cst_35 : f32 to vector<8x1xf32>
    %80 = arith.addf %76, %79 : vector<8x1xf32>
    %81 = math.rsqrt %80 : vector<8x1xf32>
    %82 = vector.broadcast %81 : vector<8x1xf32> to vector<8x128xf32>
    %83 = arith.mulf %78, %82 : vector<8x128xf32>
    %84 = vector.broadcast %64 : vector<1x128xf32> to vector<8x128xf32>
    %85 = arith.mulf %83, %84 : vector<8x128xf32>
    %86 = vector.broadcast %65 : vector<1x128xf32> to vector<8x128xf32>
    %87 = arith.addf %85, %86 : vector<8x128xf32>
    %88 = arith.truncf %87 : vector<8x128xf32> to vector<8x128xbf16>
    %c0_36 = arith.constant 0 : index
    %c0_37 = arith.constant 0 : index
    %c0_38 = arith.constant 0 : index
    %89 = vector.load %arg9[%c0_36, %c0_37, %c0_38] : memref<1x8x128xbf16, #tpu.memory_space<vmem>>, vector<1x8x128xbf16>
    %90 = vector.shape_cast %89 : vector<1x8x128xbf16> to vector<8x128xbf16>
    %91 = vector.shape_cast %88 : vector<8x128xbf16> to vector<1x8x128xbf16>
    tpu.vector_store %arg9[%c0_36, %c0_37, %c0_38], %91 {strides = array<i32>} : memref<1x8x128xbf16, #tpu.memory_space<vmem>>, vector<1x8x128xbf16>,
    return
  }
  func.func @transform_0(%arg0: i32) -> (i32, i32, i32) {
    %c0_i32 = arith.constant 0 : i32
    %c0_i32_0 = arith.constant 0 : i32
    %c0_i32_1 = arith.constant 0 : i32
    return %arg0, %c0_i32, %c0_i32_0 : i32, i32, i32
  }
  func.func @transform_1(%arg0: i32) -> (i32, i32) {
    %c0_i32 = arith.constant 0 : i32
    %c0_i32_0 = arith.constant 0 : i32
    %c0_i32_1 = arith.constant 0 : i32
    return %c0_i32, %c0_i32_0 : i32, i32
  }
  func.func @transform_2(%arg0: i32) -> (i32, i32) {
    %c0_i32 = arith.constant 0 : i32
    %c0_i32_0 = arith.constant 0 : i32
    %c0_i32_1 = arith.constant 0 : i32
    return %c0_i32, %c0_i32_0 : i32, i32
  }
  func.func @transform_3(%arg0: i32) -> (i32, i32, i32) {
    %c0_i32 = arith.constant 0 : i32
    %c0_i32_0 = arith.constant 0 : i32
    %c0_i32_1 = arith.constant 0 : i32
    return %arg0, %c0_i32, %c0_i32_0 : i32, i32, i32
  }
  func.func @transform_4(%arg0: i32) -> (i32, i32) {
    %c0_i32 = arith.constant 0 : i32
    %c0_i32_0 = arith.constant 0 : i32
    %c0_i32_1 = arith.constant 0 : i32
    return %c0_i32, %c0_i32_0 : i32, i32
  }
  func.func @transform_5(%arg0: i32) -> (i32, i32) {
    %c0_i32 = arith.constant 0 : i32
    %c0_i32_0 = arith.constant 0 : i32
    %c0_i32_1 = arith.constant 0 : i32
    return %c0_i32, %c0_i32_0 : i32, i32
  }
  func.func @transform_6(%arg0: i32) -> (i32, i32) {
    %c0_i32 = arith.constant 0 : i32
    %c0_i32_0 = arith.constant 0 : i32
    %c0_i32_1 = arith.constant 0 : i32
    return %c0_i32, %c0_i32_0 : i32, i32
  }
  func.func @transform_7(%arg0: i32) -> (i32, i32) {
    %c0_i32 = arith.constant 0 : i32
    %c0_i32_0 = arith.constant 0 : i32
    %c0_i32_1 = arith.constant 0 : i32
    return %c0_i32, %c0_i32_0 : i32, i32
  }
  func.func @transform_8(%arg0: i32) -> (i32, i32, i32) {
    %c0_i32 = arith.constant 0 : i32
    %c0_i32_0 = arith.constant 0 : i32
    %c0_i32_1 = arith.constant 0 : i32
    return %arg0, %c0_i32, %c0_i32_0 : i32, i32, i32
  }
}

module attributes {stable_mosaic.version = 11 : i64} {
  func.func @_matmul_kernel(%arg0: i32, %arg1: i32, %arg2: i32, %arg3: memref<8x128xbf16, #tpu.memory_space<vmem>>, %arg4: memref<128x128xbf16, #tpu.memory_space<vmem>>, %arg5: memref<1x128xf32, #tpu.memory_space<vmem>>, %arg6: memref<8x128xf32, #tpu.memory_space<vmem>>, %arg7: memref<8x128xf32, #tpu.memory_space<vmem>>) attributes {dimension_semantics = [#tpu.dimension_semantics<parallel>, #tpu.dimension_semantics<parallel>, #tpu.dimension_semantics<arbitrary>], iteration_bounds = array<i64: 1, 1, 1>, scalar_prefetch = 0 : i64, scratch_operands = 1 : i64, tpu.core_type = #tpu.core_type<tc>, window_params = [{transform_indices = @transform_0, window_bounds = array<i64: 8, 128>}, {transform_indices = @transform_1, window_bounds = array<i64: 128, 128>}, {transform_indices = @transform_2, window_bounds = array<i64: 1, 128>}, {transform_indices = @transform_3, window_bounds = array<i64: 8, 128>}]} {
    %c0_i32 = arith.constant 0 : i32
    %0 = arith.cmpi eq, %arg2, %c0_i32 : i32
    %1 = arith.extui %0 : i1 to i32
    %c0_i32_0 = arith.constant 0 : i32
    %2 = arith.cmpi ne, %1, %c0_i32_0 : i32
    scf.if %2 {
      %cst_10 = arith.constant 0.000000e+00 : f32
      %12 = vector.broadcast %cst_10 : f32 to vector<8x128xf32>
      %c0_11 = arith.constant 0 : index
      %c0_12 = arith.constant 0 : index
      %13 = vector.load %arg7[%c0_11, %c0_12] : memref<8x128xf32, #tpu.memory_space<vmem>>, vector<8x128xf32>
      tpu.vector_store %arg7[%c0_11, %c0_12], %12 {strides = array<i32>} : memref<8x128xf32, #tpu.memory_space<vmem>>, vector<8x128xf32>,
    } else {
    }
    %c0 = arith.constant 0 : index
    %c0_1 = arith.constant 0 : index
    %3 = vector.load %arg7[%c0, %c0_1] : memref<8x128xf32, #tpu.memory_space<vmem>>, vector<8x128xf32>
    %c0_2 = arith.constant 0 : index
    %c0_3 = arith.constant 0 : index
    %4 = vector.load %arg3[%c0_2, %c0_3] : memref<8x128xbf16, #tpu.memory_space<vmem>>, vector<8x128xbf16>
    %c0_4 = arith.constant 0 : index
    %c0_5 = arith.constant 0 : index
    %5 = vector.load %arg4[%c0_4, %c0_5] : memref<128x128xbf16, #tpu.memory_space<vmem>>, vector<128x128xbf16>
    %cst = arith.constant dense<0.000000e+00> : vector<8x128xf32>
    %6 = tpu.matmul %4, %5, %cst {dimension_numbers = #tpu.dot_dimension_numbers<[1], [0], [0], [1], [0, 0, 1, 1], [], []>} : vector<8x128xbf16>, vector<128x128xbf16>, vector<8x128xf32> -> vector<8x128xf32>
    %7 = arith.addf %3, %6 : vector<8x128xf32>
    %c0_6 = arith.constant 0 : index
    %c0_7 = arith.constant 0 : index
    %8 = vector.load %arg7[%c0_6, %c0_7] : memref<8x128xf32, #tpu.memory_space<vmem>>, vector<8x128xf32>
    tpu.vector_store %arg7[%c0_6, %c0_7], %7 {strides = array<i32>} : memref<8x128xf32, #tpu.memory_space<vmem>>, vector<8x128xf32>,
    %c0_i32_8 = arith.constant 0 : i32
    %9 = arith.cmpi eq, %arg2, %c0_i32_8 : i32
    %10 = arith.extui %9 : i1 to i32
    %c0_i32_9 = arith.constant 0 : i32
    %11 = arith.cmpi ne, %10, %c0_i32_9 : i32
    scf.if %11 {
      %c0_10 = arith.constant 0 : index
      %c0_11 = arith.constant 0 : index
      %12 = vector.load %arg7[%c0_10, %c0_11] : memref<8x128xf32, #tpu.memory_space<vmem>>, vector<8x128xf32>
      %c0_12 = arith.constant 0 : index
      %c0_13 = arith.constant 0 : index
      %13 = vector.load %arg5[%c0_12, %c0_13] : memref<1x128xf32, #tpu.memory_space<vmem>>, vector<1x128xf32>
      %14 = vector.broadcast %13 : vector<1x128xf32> to vector<8x128xf32>
      %15 = arith.addf %12, %14 : vector<8x128xf32>
      %16 = math.tanh %15 : vector<8x128xf32>
      %c0_14 = arith.constant 0 : index
      %c0_15 = arith.constant 0 : index
      %17 = vector.load %arg6[%c0_14, %c0_15] : memref<8x128xf32, #tpu.memory_space<vmem>>, vector<8x128xf32>
      tpu.vector_store %arg6[%c0_14, %c0_15], %16 {strides = array<i32>} : memref<8x128xf32, #tpu.memory_space<vmem>>, vector<8x128xf32>,
    } else {
    }
    return
  }
  func.func @transform_0(%arg0: i32, %arg1: i32, %arg2: i32) -> (i32, i32) {
    %c0_i32 = arith.constant 0 : i32
    return %arg0, %arg2 : i32, i32
  }
  func.func @transform_1(%arg0: i32, %arg1: i32, %arg2: i32) -> (i32, i32) {
    %c0_i32 = arith.constant 0 : i32
    return %arg2, %arg1 : i32, i32
  }
  func.func @transform_2(%arg0: i32, %arg1: i32, %arg2: i32) -> (i32, i32) {
    %c0_i32 = arith.constant 0 : i32
    %c0_i32_0 = arith.constant 0 : i32
    return %c0_i32, %arg1 : i32, i32
  }
  func.func @transform_3(%arg0: i32, %arg1: i32, %arg2: i32) -> (i32, i32) {
    %c0_i32 = arith.constant 0 : i32
    return %arg0, %arg1 : i32, i32
  }
}

</mosaic_0001>

<llo_original>
// kernel: bert_encode.6
$region0: #{bert_encode.6}
  #allocation0 [shape = 'u32[]', space=smem, size = 0x4, offset = 0x4, fixed_abs, tag = 'smem constant byte address 0x4 - core index']
  #allocation1 [shape = 'u32[144,128]{1,0:T(1,128)}', space=vmem, size = 0x12000, scoped, tag = 'internal scratch']
  %s0 = inlined_call_operand.vmem [shape: bf16[16,128], index: 0, kind: input, shape index: {}]
  %s1 = inlined_call_operand.vmem [shape: f32[1,128], index: 1, kind: input, shape index: {}]
  %s2 = inlined_call_operand.vmem [shape: f32[1,128], index: 2, kind: input, shape index: {}]
  %s3 = inlined_call_operand.vmem [shape: bf16[16,128], index: 3, kind: output, shape index: {}]
  %s4 = sld [smem:[#allocation0]]
  $region22: #{bert_encode.6} parent=0
    _
  %s6 = ssub.s32 1, %s4
  %s7 = scalar_select 0, %s6, %s4
  // Predicated region
  $region2: #{bert_encode.6} parent=0 // pred_check
    _
  $region3: #{bert_encode.6} parent=0 // pred_check_branch
    %9 = sbr.rel (0) target = $region5
  $region4: #{bert_encode.6} parent=0 // pred_region
    _
  $region5: #{bert_encode.6} parent=0 // pred_fallthru
    _
  // Predicated region
  $region6: #{bert_encode.6} parent=0 // pred_check
    _
  $region7: #{bert_encode.6} parent=0 // pred_check_branch
    %11 = sbr.rel (0) target = $region9
  $region8: #{bert_encode.6} parent=0 // pred_region
    _
  $region9: #{bert_encode.6} parent=0 // pred_fallthru
    _
  // Predicated region
  $region10: #{bert_encode.6} parent=0 // pred_check
    _
  $region11: #{bert_encode.6} parent=0 // pred_check_branch
    %13 = sbr.rel (0) target = $region13
  $region12: #{bert_encode.6} parent=0 // pred_region
    _
  $region13: #{bert_encode.6} parent=0 // pred_fallthru
    _
  %v14 = vld [vmem:[%s0] sm:$0xf]
  %v15 = vld [vmem:[%s0 + $0x4] sm:$0xf]
  %v16 = vunpack.c.l.bf16 %v14
  %v17 = vunpack.c.l.bf16 %v15
  %v18 = vld [vmem:[%s1] sm:$0x1]
  %v19 = vld [vmem:[%s2] sm:$0x1]
  %20 = vadd.xlane.f32.xlu0 %v16
  %v21 = vpop.xlane.xlu0 %20
  %22 = vadd.xlane.f32.xlu0 %v17
  %v23 = vpop.xlane.xlu0 %22
  %v24 = vrcp.pop 128.0
  %v25 = vmul.f32 %v21, %v24
  %v26 = vmul.f32 %v23, %v24
  %v27 = vsub.f32 %v16, %v25
  %v28 = vsub.f32 %v17, %v26
  %v29 = vmul.f32 %v27, %v27
  %v30 = vmul.f32 %v28, %v28
  %31 = vadd.xlane.f32.xlu0 %v29
  %v32 = vpop.xlane.xlu0 %31
  %33 = vadd.xlane.f32.xlu0 %v30
  %v34 = vpop.xlane.xlu0 %33
  %v35 = vmul.f32 %v32, %v24
  %v36 = vmul.f32 %v34, %v24
  %v37 = vadd.f32 %v35, 1e-12
  %v38 = vadd.f32 %v36, 1e-12
  %v39 = vrsqrt.pop %v37
  %v40 = vrsqrt.pop %v38
  %v41 = vmul.f32 %v27, %v39
  %v42 = vmul.f32 %v28, %v40
  %v44 = vlaneseq
  %v45 = vshrl.u32 %v44, 7
  %v46 = vsub.s32 0, %v45
  %v47 = vrot.slane %v18, %v46
  %v49 = vmul.f32 %v41, %v47
  %v50 = vmul.f32 %v42, %v47
  %v52 = vlaneseq
  %v53 = vshrl.u32 %v52, 7
  %v54 = vsub.s32 0, %v53
  %v55 = vrot.slane %v19, %v54
  %v57 = vadd.f32 %v49, %v55
  %v58 = vadd.f32 %v50, %v55
  %v59 = vpack.c.bf16 %v58, %v57
  %v61 = vunpack.c.l.b16 %v59
  %v62 = vunpack.c.h.b16 %v59
  %v63 = vpack.c.b16 %v61, %v61
  %v64 = vpack.c.b16 %v62, %v62
  %67 = vst [vmem:[%s3] sm:$0xf] %v63
  %68 = vst [vmem:[%s3 + $0x4] sm:$0xf] %v64
  // Predicated region
  $region14: #{bert_encode.6} parent=0 // pred_check
    _
  $region15: #{bert_encode.6} parent=0 // pred_check_branch
    %70 = sbr.rel (0) target = $region17
  $region16: #{bert_encode.6} parent=0 // pred_region
    _
  $region17: #{bert_encode.6} parent=0 // pred_fallthru
    _
  // Predicated region
  $region18: #{bert_encode.6} parent=0 // pred_check
    _
  $region19: #{bert_encode.6} parent=0 // pred_check_branch
    %72 = sbr.rel (0) target = $region21
  $region20: #{bert_encode.6} parent=0 // pred_region
    _
  $region21: #{bert_encode.6} parent=0 // pred_fallthru
    _

// kernel: bert_encode.11
$region0: #{bert_encode.11}
  #allocation0 [shape = 'u32[]', space=smem, size = 0x4, offset = 0x4, fixed_abs, tag = 'smem constant byte address 0x4 - core index']
  #allocation1 [shape = 'u32[144,128]{1,0:T(1,128)}', space=vmem, size = 0x12000, scoped, tag = 'internal scratch']
  #allocation2 [shape = 'f32[8,128]{1,0:T(8,128)}', space=vmem, size = 0x1000, scoped, tag = 'scratch operand']
  %s0 = inlined_call_operand.vmem [shape: bf16[8,128], index: 0, kind: input, shape index: {}]
  %s1 = inlined_call_operand.vmem [shape: bf16[128,128], index: 1, kind: input, shape index: {}]
  %s2 = inlined_call_operand.vmem [shape: f32[1,128], index: 2, kind: input, shape index: {}]
  %s3 = inlined_call_operand.vmem [shape: f32[8,128], index: 3, kind: output, shape index: {}]
  %s4 = sld [smem:[#allocation0]]
  $region30: #{bert_encode.11} parent=0
    _
  %s6 = ssub.s32 1, %s4
  %s7 = scalar_select 0, %s6, %s4
  // Predicated region
  $region2: #{bert_encode.11} parent=0 // pred_check
    _
  $region3: #{bert_encode.11} parent=0 // pred_check_branch
    %9 = sbr.rel (0) target = $region5
  $region4: #{bert_encode.11} parent=0 // pred_region
    _
  $region5: #{bert_encode.11} parent=0 // pred_fallthru
    _
  // Predicated region
  $region6: #{bert_encode.11} parent=0 // pred_check
    _
  $region7: #{bert_encode.11} parent=0 // pred_check_branch
    %11 = sbr.rel (0) target = $region9
  $region8: #{bert_encode.11} parent=0 // pred_region
    _
  $region9: #{bert_encode.11} parent=0 // pred_fallthru
    _
  // Predicated region
  $region10: #{bert_encode.11} parent=0 // pred_check
    _
  $region11: #{bert_encode.11} parent=0 // pred_check_branch
    %13 = sbr.rel (0) target = $region13
  $region12: #{bert_encode.11} parent=0 // pred_region
    _
  $region13: #{bert_encode.11} parent=0 // pred_fallthru
    _
  %p15 = scmp.eq.s32.totalorder 0, 0
  // Predicated region
  $region14: #{bert_encode.11} parent=0 // pred_check
    %p16 = pneg %p15
  $region15: #{bert_encode.11} parent=0 // pred_check_branch
    %18 = sbr.rel (%p16) target = $region17
  $region16: #{bert_encode.11} parent=0 // pred_region
    %19 = vst [vmem:[#allocation2] sm:$0xff] 0.0
  $region17: #{bert_encode.11} parent=0 // pred_fallthru
    _
  %v20 = vld [vmem:[#allocation2] sm:$0xff]
  %v21 = vld [vmem:[%s0] sm:$0xf]
  %v22 = vld [vmem:[%s1] sm:$0xf]
  %v23 = vld [vmem:[%s1 + $0x4] sm:$0xf]
  %v24 = vld [vmem:[%s1 + $0x8] sm:$0xf]
  %v25 = vld [vmem:[%s1 + $0xc] sm:$0xf]
  %v26 = vld [vmem:[%s1 + $0x10] sm:$0xf]
  %v27 = vld [vmem:[%s1 + $0x14] sm:$0xf]
  %v28 = vld [vmem:[%s1 + $0x18] sm:$0xf]
  %v29 = vld [vmem:[%s1 + $0x1c] sm:$0xf]
  %v30 = vld [vmem:[%s1 + $0x20] sm:$0xf]
  %v31 = vld [vmem:[%s1 + $0x24] sm:$0xf]
  %v32 = vld [vmem:[%s1 + $0x28] sm:$0xf]
  %v33 = vld [vmem:[%s1 + $0x2c] sm:$0xf]
  %v34 = vld [vmem:[%s1 + $0x30] sm:$0xf]
  %v35 = vld [vmem:[%s1 + $0x34] sm:$0xf]
  %v36 = vld [vmem:[%s1 + $0x38] sm:$0xf]
  %v37 = vld [vmem:[%s1 + $0x3c] sm:$0xf]
  %v54 = vunpack.c.l.b16 %v22
  %v55 = vunpack.c.l.b16 %v23
  %v56 = vunpack.c.l.b16 %v24
  %v57 = vunpack.c.l.b16 %v25
  %v58 = vunpack.c.l.b16 %v26
  %v59 = vunpack.c.l.b16 %v27
  %v60 = vunpack.c.l.b16 %v28
  %v61 = vunpack.c.l.b16 %v29
  %v62 = vunpack.c.l.b16 %v30
  %v63 = vunpack.c.l.b16 %v31
  %v64 = vunpack.c.l.b16 %v32
  %v65 = vunpack.c.l.b16 %v33
  %v66 = vunpack.c.l.b16 %v34
  %v67 = vunpack.c.l.b16 %v35
  %v68 = vunpack.c.l.b16 %v36
  %v69 = vunpack.c.l.b16 %v37
  %v70 = vpack.c.b16 %v55, %v54
  %v71 = vpack.c.b16 %v57, %v56
  %v72 = vpack.c.b16 %v59, %v58
  %v73 = vpack.c.b16 %v61, %v60
  %v74 = vpack.c.b16 %v63, %v62
  %v75 = vpack.c.b16 %v65, %v64
  %v76 = vpack.c.b16 %v67, %v66
  %v77 = vpack.c.b16 %v69, %v68
  %86 = vmatprep.subr.bf16.mxu0 0
  %87 = vmatpush1.bf16.msra.mxu0 %v70
  %88 = vmatprep.subr.bf16.mxu0 0
  %89 = vmatpush1.bf16.msra.mxu0 %v71
  %90 = vmatprep.subr.bf16.mxu0 0
  %91 = vmatpush1.bf16.msra.mxu0 %v72
  %92 = vmatprep.subr.bf16.mxu0 0
  %93 = vmatpush1.bf16.msra.mxu0 %v73
  %94 = vmatprep.subr.bf16.mxu0 0
  %95 = vmatpush1.bf16.msra.mxu0 %v74
  %96 = vmatprep.subr.bf16.mxu0 0
  %97 = vmatpush1.bf16.msra.mxu0 %v75
  %98 = vmatprep.subr.bf16.mxu0 0
  %99 = vmatpush1.bf16.msra.mxu0 %v76
  %100 = vmatprep.subr.bf16.mxu0 0
  %101 = vmatpush1.bf16.msra.mxu0 %v77
  %102 = vmatprep.subr.bf16.mxu0 0
  %103 = vmatpush1.bf16.msra.mxu0 0
  %104 = vmatprep.subr.bf16.mxu0 0
  %105 = vmatpush1.bf16.msra.mxu0 0
  %106 = vmatprep.subr.bf16.mxu0 0
  %107 = vmatpush1.bf16.msra.mxu0 0
  %108 = vmatprep.subr.bf16.mxu0 0
  %109 = vmatpush1.bf16.msra.mxu0 0
  %110 = vmatprep.subr.bf16.mxu0 0
  %111 = vmatpush1.bf16.msra.mxu0 0
  %112 = vmatprep.subr.bf16.mxu0 0
  %113 = vmatpush1.bf16.msra.mxu0 0
  %114 = vmatprep.subr.bf16.mxu0 0
  %115 = vmatpush1.bf16.msra.mxu0 0
  %116 = vmatprep.subr.bf16.mxu0 0
  %117 = vmatpush1.bf16.msra.mxu0 0
  %118 = vmatprep.mubr.bf16.mxu0 0
  %119 = vmatmul.mubr.bf16.gmra.mrb[0].mxu0 %v21
  %v120 = vpop.f32.mrb[0].mxu0
  %v121 = vadd.f32 0.0, %v120
  %v122 = vpop.f32.mrb[0].mxu0
  %v123 = vpop.f32.mrb[0].mxu0
  %v124 = vpop.f32.mrb[0].mxu0
  %125 = vdwg.mxu0
  %v126 = vadd.f32 %v20, %v121
  %127 = vst [vmem:[#allocation2] sm:$0xff] %v126
  // Predicated region
  $region18: #{bert_encode.11} parent=0 // pred_check
    %p128 = pneg %p15
  $region19: #{bert_encode.11} parent=0 // pred_check_branch
    %130 = sbr.rel (%p128) target = $region21
  $region20: #{bert_encode.11} parent=0 // pred_region
    %v131 = vld [vmem:[#allocation2] sm:$0xff]
    %v132 = vld [vmem:[%s2] sm:$0x1]
    %v134 = vlaneseq
    %v135 = vshrl.u32 %v134, 7
    %v136 = vsub.s32 0, %v135
    %v137 = vrot.slane %v132, %v136
    %v139 = vadd.f32 %v131, %v137
    %v140 = vtanh.pop %v139
    %141 = vst [vmem:[%s3] sm:$0xff] %v140
  $region21: #{bert_encode.11} parent=0 // pred_fallthru
    _
  // Predicated region
  $region22: #{bert_encode.11} parent=0 // pred_check
    _
  $region23: #{bert_encode.11} parent=0 // pred_check_branch
    %143 = sbr.rel (0) target = $region25
  $region24: #{bert_encode.11} parent=0 // pred_region
    _
  $region25: #{bert_encode.11} parent=0 // pred_fallthru
    _
  // Predicated region
  $region26: #{bert_encode.11} parent=0 // pred_check
    _
  $region27: #{bert_encode.11} parent=0 // pred_check_branch
    %145 = sbr.rel (0) target = $region29
  $region28: #{bert_encode.11} parent=0 // pred_region
    _
  $region29: #{bert_encode.11} parent=0 // pred_fallthru
    _

// kernel: bert_encode.8
$region0: #{bert_encode.8}
  #allocation0 [shape = 'u32[]', space=smem, size = 0x4, offset = 0x4, fixed_abs, tag = 'smem constant byte address 0x4 - core index']
  #allocation1 [shape = 'u32[144,128]{1,0:T(1,128)}', space=vmem, size = 0x12000, scoped, tag = 'internal scratch']
  %s0 = inlined_call_operand.vmem [shape: bf16[16,128], index: 0, kind: input, shape index: {}]
  %s1 = inlined_call_operand.vmem [shape: bf16[128,256], index: 1, kind: input, shape index: {}]
  %s2 = inlined_call_operand.vmem [shape: f32[1,256], index: 2, kind: input, shape index: {}]
  %s3 = inlined_call_operand.vmem [shape: bf16[256,128], index: 3, kind: input, shape index: {}]
  %s4 = inlined_call_operand.vmem [shape: f32[1,128], index: 4, kind: input, shape index: {}]
  %s5 = inlined_call_operand.vmem [shape: f32[1,128], index: 5, kind: input, shape index: {}]
  %s6 = inlined_call_operand.vmem [shape: f32[1,128], index: 6, kind: input, shape index: {}]
  %s7 = inlined_call_operand.vmem [shape: bf16[16,128], index: 7, kind: output, shape index: {}]
  %s8 = sld [smem:[#allocation0]]
  $region38: #{bert_encode.8} parent=0
    _
  %s10 = ssub.s32 1, %s8
  %s11 = scalar_select 0, %s10, %s8
  // Predicated region
  $region2: #{bert_encode.8} parent=0 // pred_check
    _
  $region3: #{bert_encode.8} parent=0 // pred_check_branch
    %13 = sbr.rel (0) target = $region5
  $region4: #{bert_encode.8} parent=0 // pred_region
    _
  $region5: #{bert_encode.8} parent=0 // pred_fallthru
    _
  // Predicated region
  $region6: #{bert_encode.8} parent=0 // pred_check
    _
  $region7: #{bert_encode.8} parent=0 // pred_check_branch
    %15 = sbr.rel (0) target = $region9
  $region8: #{bert_encode.8} parent=0 // pred_region
    _
  $region9: #{bert_encode.8} parent=0 // pred_fallthru
    _
  // Predicated region
  $region10: #{bert_encode.8} parent=0 // pred_check
    _
  $region11: #{bert_encode.8} parent=0 // pred_check_branch
    %17 = sbr.rel (0) target = $region13
  $region12: #{bert_encode.8} parent=0 // pred_region
    _
  $region13: #{bert_encode.8} parent=0 // pred_fallthru
    _
  // Predicated region
  $region14: #{bert_encode.8} parent=0 // pred_check
    _
  $region15: #{bert_encode.8} parent=0 // pred_check_branch
    %19 = sbr.rel (0) target = $region17
  $region16: #{bert_encode.8} parent=0 // pred_region
    _
  $region17: #{bert_encode.8} parent=0 // pred_fallthru
    _
  // Predicated region
  $region18: #{bert_encode.8} parent=0 // pred_check
    _
  $region19: #{bert_encode.8} parent=0 // pred_check_branch
    %21 = sbr.rel (0) target = $region21
  $region20: #{bert_encode.8} parent=0 // pred_region
    _
  $region21: #{bert_encode.8} parent=0 // pred_fallthru
    _
  // Predicated region
  $region22: #{bert_encode.8} parent=0 // pred_check
    _
  $region23: #{bert_encode.8} parent=0 // pred_check_branch
    %23 = sbr.rel (0) target = $region25
  $region24: #{bert_encode.8} parent=0 // pred_region
    _
  $region25: #{bert_encode.8} parent=0 // pred_fallthru
    _
  // Predicated region
  $region26: #{bert_encode.8} parent=0 // pred_check
    _
  $region27: #{bert_encode.8} parent=0 // pred_check_branch
    %25 = sbr.rel (0) target = $region29
  $region28: #{bert_encode.8} parent=0 // pred_region
    _
  $region29: #{bert_encode.8} parent=0 // pred_fallthru
    _
  %v27 = vld [vmem:[%s0] sm:$0xf]
  %v28 = vld [vmem:[%s0 + $0x4] sm:$0xf]
  %v29 = vld [vmem:[%s1] sm:$0xff]
  %v30 = vld [vmem:[%s1 + $0x8] sm:$0xff]
  %v31 = vld [vmem:[%s1 + $0x10] sm:$0xff]
  %v32 = vld [vmem:[%s1 + $0x18] sm:$0xff]
  %v33 = vld [vmem:[%s1 + $0x20] sm:$0xff]
  %v34 = vld [vmem:[%s1 + $0x28] sm:$0xff]
  %v35 = vld [vmem:[%s1 + $0x30] sm:$0xff]
  %v36 = vld [vmem:[%s1 + $0x38] sm:$0xff]
  %v37 = vld [vmem:[%s1 + $0x40] sm:$0xff]
  %v38 = vld [vmem:[%s1 + $0x48] sm:$0xff]
  %v39 = vld [vmem:[%s1 + $0x50] sm:$0xff]
  %v40 = vld [vmem:[%s1 + $0x58] sm:$0xff]
  %v41 = vld [vmem:[%s1 + $0x60] sm:$0xff]
  %v42 = vld [vmem:[%s1 + $0x68] sm:$0xff]
  %v43 = vld [vmem:[%s1 + $0x70] sm:$0xff]
  %v44 = vld [vmem:[%s1 + $0x78] sm:$0xff]
  %v45 = vld [vmem:[%s2] sm:$0x3]
  %v47 = vlaneseq
  %v48 = vshrl.u32 %v47, 7
  %v49 = vsub.s32 0, %v48
  %v50 = vrot.slane %v45, %v49
  %v51 = vlaneseq
  %v52 = vshrl.u32 %v51, 7
  %v53 = vsub.s32 1, %v52
  %v54 = vrot.slane %v45, %v53
  %v59 = vunpack.c.l.b16 %v27
  %v60 = vunpack.c.l.b16 %v28
  %v61 = vpack.c.b16 %v60, %v59
  %v79 = vunpack.c.l.b16 %v29
  %v80 = vunpack.c.h.b16 %v29
  %v81 = vunpack.c.l.b16 %v30
  %v82 = vunpack.c.h.b16 %v30
  %v83 = vunpack.c.l.b16 %v31
  %v84 = vunpack.c.h.b16 %v31
  %v85 = vunpack.c.l.b16 %v32
  %v86 = vunpack.c.h.b16 %v32
  %v87 = vunpack.c.l.b16 %v33
  %v88 = vunpack.c.h.b16 %v33
  %v89 = vunpack.c.l.b16 %v34
  %v90 = vunpack.c.h.b16 %v34
  %v91 = vunpack.c.l.b16 %v35
  %v92 = vunpack.c.h.b16 %v35
  %v93 = vunpack.c.l.b16 %v36
  %v94 = vunpack.c.h.b16 %v36
  %v95 = vunpack.c.l.b16 %v37
  %v96 = vunpack.c.h.b16 %v37
  %v97 = vunpack.c.l.b16 %v38
  %v98 = vunpack.c.h.b16 %v38
  %v99 = vunpack.c.l.b16 %v39
  %v100 = vunpack.c.h.b16 %v39
  %v101 = vunpack.c.l.b16 %v40
  %v102 = vunpack.c.h.b16 %v40
  %v103 = vunpack.c.l.b16 %v41
  %v104 = vunpack.c.h.b16 %v41
  %v105 = vunpack.c.l.b16 %v42
  %v106 = vunpack.c.h.b16 %v42
  %v107 = vunpack.c.l.b16 %v43
  %v108 = vunpack.c.h.b16 %v43
  %v109 = vunpack.c.l.b16 %v44
  %v110 = vunpack.c.h.b16 %v44
  %v111 = vpack.c.b16 %v81, %v79
  %v112 = vpack.c.b16 %v82, %v80
  %v113 = vpack.c.b16 %v85, %v83
  %v114 = vpack.c.b16 %v86, %v84
  %v115 = vpack.c.b16 %v89, %v87
  %v116 = vpack.c.b16 %v90, %v88
  %v117 = vpack.c.b16 %v93, %v91
  %v118 = vpack.c.b16 %v94, %v92
  %v119 = vpack.c.b16 %v97, %v95
  %v120 = vpack.c.b16 %v98, %v96
  %v121 = vpack.c.b16 %v101, %v99
  %v122 = vpack.c.b16 %v102, %v100
  %v123 = vpack.c.b16 %v105, %v103
  %v124 = vpack.c.b16 %v106, %v104
  %v125 = vpack.c.b16 %v109, %v107
  %v126 = vpack.c.b16 %v110, %v108
  %143 = vmatprep.subr.bf16.mxu0 %v112
  %144 = vmatpush1.bf16.msra.mxu0 %v111
  %145 = vmatprep.subr.bf16.mxu0 %v114
  %146 = vmatpush1.bf16.msra.mxu0 %v113
  %147 = vmatprep.subr.bf16.mxu0 %v116
  %148 = vmatpush1.bf16.msra.mxu0 %v115
  %149 = vmatprep.subr.bf16.mxu0 %v118
  %150 = vmatpush1.bf16.msra.mxu0 %v117
  %151 = vmatprep.subr.bf16.mxu0 %v120
  %152 = vmatpush1.bf16.msra.mxu0 %v119
  %153 = vmatprep.subr.bf16.mxu0 %v122
  %154 = vmatpush1.bf16.msra.mxu0 %v121
  %155 = vmatprep.subr.bf16.mxu0 %v124
  %156 = vmatpush1.bf16.msra.mxu0 %v123
  %157 = vmatprep.subr.bf16.mxu0 %v126
  %158 = vmatpush1.bf16.msra.mxu0 %v125
  %159 = vmatprep.subr.bf16.mxu0 0
  %160 = vmatpush1.bf16.msra.mxu0 0
  %161 = vmatprep.subr.bf16.mxu0 0
  %162 = vmatpush1.bf16.msra.mxu0 0
  %163 = vmatprep.subr.bf16.mxu0 0
  %164 = vmatpush1.bf16.msra.mxu0 0
  %165 = vmatprep.subr.bf16.mxu0 0
  %166 = vmatpush1.bf16.msra.mxu0 0
  %167 = vmatprep.subr.bf16.mxu0 0
  %168 = vmatpush1.bf16.msra.mxu0 0
  %169 = vmatprep.subr.bf16.mxu0 0
  %170 = vmatpush1.bf16.msra.mxu0 0
  %171 = vmatprep.subr.bf16.mxu0 0
  %172 = vmatpush1.bf16.msra.mxu0 0
  %173 = vmatprep.subr.bf16.mxu0 0
  %174 = vmatpush1.bf16.msra.mxu0 0
  %175 = vmatprep.mubr.bf16.mxu0 0
  %176 = vmatmul.mubr.bf16.gmra.mrb[0].mxu0 %v61
  %v177 = vpop.f32.mrb[0].mxu0
  %v178 = vadd.f32 %v50, %v177
  %v179 = vpop.f32.mrb[0].mxu0
  %v180 = vadd.f32 %v54, %v179
  %v181 = vpop.f32.mrb[0].mxu0
  %v182 = vadd.f32 %v50, %v181
  %v183 = vpop.f32.mrb[0].mxu0
  %v184 = vadd.f32 %v54, %v183
  %185 = vdwg.mxu0
  %v186 = vmul.f32 %v178, 0.5
  %v187 = vmul.f32 %v180, 0.5
  %v188 = vmul.f32 %v182, 0.5
  %v189 = vmul.f32 %v184, 0.5
  %v190 = vmul.f32 %v178, 0.70710677
  %v191 = vmul.f32 %v180, 0.70710677
  %v192 = vmul.f32 %v182, 0.70710677
  %v193 = vmul.f32 %v184, 0.70710677
  %v194 = verf.f32.pop %v190
  %v195 = verf.f32.pop %v191
  %v196 = verf.f32.pop %v192
  %v197 = verf.f32.pop %v193
  %v198 = vadd.f32 %v194, 1.0
  %v199 = vadd.f32 %v195, 1.0
  %v200 = vadd.f32 %v196, 1.0
  %v201 = vadd.f32 %v197, 1.0
  %v202 = vmul.f32 %v186, %v198
  %v203 = vmul.f32 %v187, %v199
  %v204 = vmul.f32 %v188, %v200
  %v205 = vmul.f32 %v189, %v201
  %v206 = vpack.c.bf16 %v204, %v202
  %v207 = vpack.c.bf16 %v205, %v203
  %v208 = vld [vmem:[%s3] sm:$0xf]
  %v209 = vld [vmem:[%s3 + $0x4] sm:$0xf]
  %v210 = vld [vmem:[%s3 + $0x8] sm:$0xf]
  %v211 = vld [vmem:[%s3 + $0xc] sm:$0xf]
  %v212 = vld [vmem:[%s3 + $0x10] sm:$0xf]
  %v213 = vld [vmem:[%s3 + $0x14] sm:$0xf]
  %v214 = vld [vmem:[%s3 + $0x18] sm:$0xf]
  %v215 = vld [vmem:[%s3 + $0x1c] sm:$0xf]
  %v216 = vld [vmem:[%s3 + $0x20] sm:$0xf]
  %v217 = vld [vmem:[%s3 + $0x24] sm:$0xf]
  %v218 = vld [vmem:[%s3 + $0x28] sm:$0xf]
  %v219 = vld [vmem:[%s3 + $0x2c] sm:$0xf]
  %v220 = vld [vmem:[%s3 + $0x30] sm:$0xf]
  %v221 = vld [vmem:[%s3 + $0x34] sm:$0xf]
  %v222 = vld [vmem:[%s3 + $0x38] sm:$0xf]
  %v223 = vld [vmem:[%s3 + $0x3c] sm:$0xf]
  %v224 = vld [vmem:[%s3 + $0x40] sm:$0xf]
  %v225 = vld [vmem:[%s3 + $0x44] sm:$0xf]
  %v226 = vld [vmem:[%s3 + $0x48] sm:$0xf]
  %v227 = vld [vmem:[%s3 + $0x4c] sm:$0xf]
  %v228 = vld [vmem:[%s3 + $0x50] sm:$0xf]
  %v229 = vld [vmem:[%s3 + $0x54] sm:$0xf]
  %v230 = vld [vmem:[%s3 + $0x58] sm:$0xf]
  %v231 = vld [vmem:[%s3 + $0x5c] sm:$0xf]
  %v232 = vld [vmem:[%s3 + $0x60] sm:$0xf]
  %v233 = vld [vmem:[%s3 + $0x64] sm:$0xf]
  %v234 = vld [vmem:[%s3 + $0x68] sm:$0xf]
  %v235 = vld [vmem:[%s3 + $0x6c] sm:$0xf]
  %v236 = vld [vmem:[%s3 + $0x70] sm:$0xf]
  %v237 = vld [vmem:[%s3 + $0x74] sm:$0xf]
  %v238 = vld [vmem:[%s3 + $0x78] sm:$0xf]
  %v239 = vld [vmem:[%s3 + $0x7c] sm:$0xf]
  %v240 = vld [vmem:[%s4] sm:$0x1]
  %v242 = vlaneseq
  %v243 = vshrl.u32 %v242, 7
  %v244 = vsub.s32 0, %v243
  %v245 = vrot.slane %v240, %v244
  %v279 = vunpack.c.l.b16 %v208
  %v280 = vunpack.c.l.b16 %v209
  %v281 = vunpack.c.l.b16 %v210
  %v282 = vunpack.c.l.b16 %v211
  %v283 = vunpack.c.l.b16 %v212
  %v284 = vunpack.c.l.b16 %v213
  %v285 = vunpack.c.l.b16 %v214
  %v286 = vunpack.c.l.b16 %v215
  %v287 = vunpack.c.l.b16 %v216
  %v288 = vunpack.c.l.b16 %v217
  %v289 = vunpack.c.l.b16 %v218
  %v290 = vunpack.c.l.b16 %v219
  %v291 = vunpack.c.l.b16 %v220
  %v292 = vunpack.c.l.b16 %v221
  %v293 = vunpack.c.l.b16 %v222
  %v294 = vunpack.c.l.b16 %v223
  %v295 = vunpack.c.l.b16 %v224
  %v296 = vunpack.c.l.b16 %v225
  %v297 = vunpack.c.l.b16 %v226
  %v298 = vunpack.c.l.b16 %v227
  %v299 = vunpack.c.l.b16 %v228
  %v300 = vunpack.c.l.b16 %v229
  %v301 = vunpack.c.l.b16 %v230
  %v302 = vunpack.c.l.b16 %v231
  %v303 = vunpack.c.l.b16 %v232
  %v304 = vunpack.c.l.b16 %v233
  %v305 = vunpack.c.l.b16 %v234
  %v306 = vunpack.c.l.b16 %v235
  %v307 = vunpack.c.l.b16 %v236
  %v308 = vunpack.c.l.b16 %v237
  %v309 = vunpack.c.l.b16 %v238
  %v310 = vunpack.c.l.b16 %v239
  %v311 = vpack.c.b16 %v280, %v279
  %v312 = vpack.c.b16 %v282, %v281
  %v313 = vpack.c.b16 %v284, %v283
  %v314 = vpack.c.b16 %v286, %v285
  %v315 = vpack.c.b16 %v288, %v287
  %v316 = vpack.c.b16 %v290, %v289
  %v317 = vpack.c.b16 %v292, %v291
  %v318 = vpack.c.b16 %v294, %v293
  %v319 = vpack.c.b16 %v296, %v295
  %v320 = vpack.c.b16 %v298, %v297
  %v321 = vpack.c.b16 %v300, %v299
  %v322 = vpack.c.b16 %v302, %v301
  %v323 = vpack.c.b16 %v304, %v303
  %v324 = vpack.c.b16 %v306, %v305
  %v325 = vpack.c.b16 %v308, %v307
  %v326 = vpack.c.b16 %v310, %v309
  %343 = vmatprep.subr.bf16.mxu0 0
  %344 = vmatpush1.bf16.msra.mxu0 %v311
  %345 = vmatprep.subr.bf16.mxu0 0
  %346 = vmatpush1.bf16.msra.mxu0 %v312
  %347 = vmatprep.subr.bf16.mxu0 0
  %348 = vmatpush1.bf16.msra.mxu0 %v313
  %349 = vmatprep.subr.bf16.mxu0 0
  %350 = vmatpush1.bf16.msra.mxu0 %v314
  %351 = vmatprep.subr.bf16.mxu0 0
  %352 = vmatpush1.bf16.msra.mxu0 %v315
  %353 = vmatprep.subr.bf16.mxu0 0
  %354 = vmatpush1.bf16.msra.mxu0 %v316
  %355 = vmatprep.subr.bf16.mxu0 0
  %356 = vmatpush1.bf16.msra.mxu0 %v317
  %357 = vmatprep.subr.bf16.mxu0 0
  %358 = vmatpush1.bf16.msra.mxu0 %v318
  %359 = vmatprep.subr.bf16.mxu0 0
  %360 = vmatpush1.bf16.msra.mxu0 %v319
  %361 = vmatprep.subr.bf16.mxu0 0
  %362 = vmatpush1.bf16.msra.mxu0 %v320
  %363 = vmatprep.subr.bf16.mxu0 0
  %364 = vmatpush1.bf16.msra.mxu0 %v321
  %365 = vmatprep.subr.bf16.mxu0 0
  %366 = vmatpush1.bf16.msra.mxu0 %v322
  %367 = vmatprep.subr.bf16.mxu0 0
  %368 = vmatpush1.bf16.msra.mxu0 %v323
  %369 = vmatprep.subr.bf16.mxu0 0
  %370 = vmatpush1.bf16.msra.mxu0 %v324
  %371 = vmatprep.subr.bf16.mxu0 0
  %372 = vmatpush1.bf16.msra.mxu0 %v325
  %373 = vmatprep.subr.bf16.mxu0 0
  %374 = vmatpush1.bf16.msra.mxu0 %v326
  %375 = vmatprep.mubr.bf16.mxu0 %v207
  %376 = vmatmul.mubr.bf16.gmra.mrb[0].mxu0 %v206
  %v377 = vpop.f32.mrb[0].mxu0
  %v378 = vadd.f32 %v245, %v377
  %v379 = vpop.f32.mrb[0].mxu0
  %v380 = vpop.f32.mrb[0].mxu0
  %v381 = vadd.f32 %v245, %v380
  %v382 = vpop.f32.mrb[0].mxu0
  %383 = vdwg.mxu0
  %v384 = vunpack.c.l.bf16 %v27
  %v385 = vunpack.c.l.bf16 %v28
  %v386 = vadd.f32 %v378, %v384
  %v387 = vadd.f32 %v381, %v385
  %v388 = vld [vmem:[%s5] sm:$0x1]
  %v389 = vld [vmem:[%s6] sm:$0x1]
  %390 = vadd.xlane.f32.xlu0 %v386
  %v391 = vpop.xlane.xlu0 %390
  %392 = vadd.xlane.f32.xlu0 %v387
  %v393 = vpop.xlane.xlu0 %392
  %v394 = vrcp.pop 128.0
  %v395 = vmul.f32 %v391, %v394
  %v396 = vmul.f32 %v393, %v394
  %v397 = vsub.f32 %v386, %v395
  %v398 = vsub.f32 %v387, %v396
  %v399 = vmul.f32 %v397, %v397
  %v400 = vmul.f32 %v398, %v398
  %401 = vadd.xlane.f32.xlu0 %v399
  %v402 = vpop.xlane.xlu0 %401
  %403 = vadd.xlane.f32.xlu0 %v400
  %v404 = vpop.xlane.xlu0 %403
  %v405 = vmul.f32 %v402, %v394
  %v406 = vmul.f32 %v404, %v394
  %v407 = vadd.f32 %v405, 1e-12
  %v408 = vadd.f32 %v406, 1e-12
  %v409 = vrsqrt.pop %v407
  %v410 = vrsqrt.pop %v408
  %v411 = vmul.f32 %v397, %v409
  %v412 = vmul.f32 %v398, %v410
  %v414 = vlaneseq
  %v415 = vshrl.u32 %v414, 7
  %v416 = vsub.s32 0, %v415
  %v417 = vrot.slane %v388, %v416
  %v419 = vmul.f32 %v411, %v417
  %v420 = vmul.f32 %v412, %v417
  %v422 = vlaneseq
  %v423 = vshrl.u32 %v422, 7
  %v424 = vsub.s32 0, %v423
  %v425 = vrot.slane %v389, %v424
  %v427 = vadd.f32 %v419, %v425
  %v428 = vadd.f32 %v420, %v425
  %v429 = vpack.c.bf16 %v428, %v427
  %v431 = vunpack.c.l.b16 %v429
  %v432 = vunpack.c.h.b16 %v429
  %v433 = vpack.c.b16 %v431, %v431
  %v434 = vpack.c.b16 %v432, %v432
  %437 = vst [vmem:[%s7] sm:$0xf] %v433
  %438 = vst [vmem:[%s7 + $0x4] sm:$0xf] %v434
  // Predicated region
  $region30: #{bert_encode.8} parent=0 // pred_check
    _
  $region31: #{bert_encode.8} parent=0 // pred_check_branch
    %440 = sbr.rel (0) target = $region33
  $region32: #{bert_encode.8} parent=0 // pred_region
    _
  $region33: #{bert_encode.8} parent=0 // pred_fallthru
    _
  // Predicated region
  $region34: #{bert_encode.8} parent=0 // pred_check
    _
  $region35: #{bert_encode.8} parent=0 // pred_check_branch
    %442 = sbr.rel (0) target = $region37
  $region36: #{bert_encode.8} parent=0 // pred_region
    _
  $region37: #{bert_encode.8} parent=0 // pred_fallthru
    _

// kernel: bert_encode.7
$region0: #{bert_encode.7}
  #allocation0 [shape = 'u32[]', space=smem, size = 0x4, offset = 0x4, fixed_abs, tag = 'smem constant byte address 0x4 - core index']
  #allocation1 [shape = 'u32[144,128]{1,0:T(1,128)}', space=vmem, size = 0x12000, scoped, tag = 'internal scratch']
  %s0 = inlined_call_operand.vmem [shape: bf16[2,8,128], index: 0, kind: input, shape index: {}]
  %s1 = inlined_call_operand.vmem [shape: bf16[128,384], index: 1, kind: input, shape index: {}]
  %s2 = inlined_call_operand.vmem [shape: f32[1,384], index: 2, kind: input, shape index: {}]
  %s3 = inlined_call_operand.vmem [shape: f32[2,1,8], index: 3, kind: input, shape index: {}]
  %s4 = inlined_call_operand.vmem [shape: bf16[128,128], index: 4, kind: input, shape index: {}]
  %s5 = inlined_call_operand.vmem [shape: f32[1,128], index: 5, kind: input, shape index: {}]
  %s6 = inlined_call_operand.vmem [shape: f32[1,128], index: 6, kind: input, shape index: {}]
  %s7 = inlined_call_operand.vmem [shape: f32[1,128], index: 7, kind: input, shape index: {}]
  %s8 = inlined_call_operand.vmem [shape: bf16[2,8,128], index: 8, kind: output, shape index: {}]
  %s9 = sld [smem:[#allocation0]]
  $region65: #{bert_encode.7} parent=0
    _
  %s11 = ssub.s32 1, %s9
  %s12 = scalar_select 0, %s11, %s9
  loop: start=0, step=1, limit=4
  $region2: #{bert_encode.7} parent=0 // loop_pre_header
    _
  $region3: #{bert_encode.7} parent=0 // loop_header
    %s14 = sphi 0, %s18
    %p15 = scmp.ge.s32.totalorder %s14, 4
    %s24 = sphi 0, %s26
    %s27 = sphi 0, %s24
    %s28 = sphi 0, %s27
    %s44 = sphi 0, %s28
    %s48 = sphi 0, %s48
    %s50 = sphi 0, %s48
    %s51 = sphi 0, %s50
    %s65 = sphi 0, %s51
    %s69 = sphi 0, %s69
    %s71 = sphi 0, %s69
    %s72 = sphi 0, %s71
    %s86 = sphi 0, %s72
    %s92 = sphi 0, %s94
    %s95 = sphi 0, %s92
    %s96 = sphi 0, %s95
    %s112 = sphi 0, %s96
    %s116 = sphi 0, %s116
    %s118 = sphi 0, %s116
    %s119 = sphi 0, %s118
    %s133 = sphi 0, %s119
    %s137 = sphi 0, %s137
    %s139 = sphi 0, %s137
    %s140 = sphi 0, %s139
    %s154 = sphi 0, %s140
    %s158 = sphi 0, %s158
    %s160 = sphi 0, %s158
    %s161 = sphi 0, %s160
    %s175 = sphi 0, %s161
    %s179 = sphi 0, %s179
    %s181 = sphi 0, %s179
    %s182 = sphi 0, %s181
    %s196 = sphi 0, %s182
    %s202 = sphi 0, %s204
    %s205 = sphi 0, %s202
    %s206 = sphi 0, %s205
    %s222 = sphi 0, %s206
  $region4: #{bert_encode.7} parent=0 // loop_header_branch
    %17 = sbr.rel (%p15) target = $region8
  $region5: #{bert_encode.7} parent=0 // loop_body
    %s19 = ssub.s32 %s14, 1
    %s20 = ssub.s32 %s14, 2
    %s21 = sadd.s32 %s14, 1
    %s22 = ssub.s32 %s14, %s21
    %p23 = scmp.eq.s32.totalorder %s22, 0
    %s25 = sadd.s32 %s24, 1
    %s26 = scalar_select %p23, %s24, %s25
    %p29 = pneg %p23
    %p30 = scmp.eq.s32.totalorder %s14, 1
    %p31 = por %p29, %p30
    %p32 = scmp.ne.s32.totalorder %s24, %s27
    %p33 = scmp.eq.s32.totalorder %s14, 0
    %p34 = por %p32, %p33
    %p35 = scmp.ne.s32.totalorder %s24, %s27
    %p36 = scmp.eq.s32.totalorder %s19, 1
    %p37 = por %p35, %p36
    %p38 = scmp.ne.s32.totalorder %s27, %s28
    %p39 = scmp.eq.s32.totalorder %s19, 0
    %p40 = por %p38, %p39
    %p41 = scmp.ne.s32.totalorder %s27, %s28
    %p42 = scmp.eq.s32.totalorder %s20, 1
    %p43 = por %p41, %p42
    %p45 = scmp.ne.s32.totalorder %s28, %s44
    %p46 = scmp.eq.s32.totalorder %s20, 0
    %p47 = por %p45, %p46
    %s49 = sadd.s32 %s48, 1
    %p52 = scmp.eq.s32.totalorder %s14, 1
    %p53 = scmp.ne.s32.totalorder %s48, %s50
    %p54 = scmp.eq.s32.totalorder %s14, 0
    %p55 = por %p53, %p54
    %p56 = scmp.ne.s32.totalorder %s48, %s50
    %p57 = scmp.eq.s32.totalorder %s19, 1
    %p58 = por %p56, %p57
    %p59 = scmp.ne.s32.totalorder %s50, %s51
    %p60 = scmp.eq.s32.totalorder %s19, 0
    %p61 = por %p59, %p60
    %p62 = scmp.ne.s32.totalorder %s50, %s51
    %p63 = scmp.eq.s32.totalorder %s20, 1
    %p64 = por %p62, %p63
    %p66 = scmp.ne.s32.totalorder %s51, %s65
    %p67 = scmp.eq.s32.totalorder %s20, 0
    %p68 = por %p66, %p67
    %s70 = sadd.s32 %s69, 1
    %p73 = scmp.eq.s32.totalorder %s14, 1
    %p74 = scmp.ne.s32.totalorder %s69, %s71
    %p75 = scmp.eq.s32.totalorder %s14, 0
    %p76 = por %p74, %p75
    %p77 = scmp.ne.s32.totalorder %s69, %s71
    %p78 = scmp.eq.s32.totalorder %s19, 1
    %p79 = por %p77, %p78
    %p80 = scmp.ne.s32.totalorder %s71, %s72
    %p81 = scmp.eq.s32.totalorder %s19, 0
    %p82 = por %p80, %p81
    %p83 = scmp.ne.s32.totalorder %s71, %s72
    %p84 = scmp.eq.s32.totalorder %s20, 1
    %p85 = por %p83, %p84
    %p87 = scmp.ne.s32.totalorder %s72, %s86
    %p88 = scmp.eq.s32.totalorder %s20, 0
    %p89 = por %p87, %p88
    %s90 = ssub.s32 %s14, %s21
    %p91 = scmp.eq.s32.totalorder %s90, 0
    %s93 = sadd.s32 %s92, 1
    %s94 = scalar_select %p91, %s92, %s93
    %p97 = pneg %p91
    %p98 = scmp.eq.s32.totalorder %s14, 1
    %p99 = por %p97, %p98
    %p100 = scmp.ne.s32.totalorder %s92, %s95
    %p101 = scmp.eq.s32.totalorder %s14, 0
    %p102 = por %p100, %p101
    %p103 = scmp.ne.s32.totalorder %s92, %s95
    %p104 = scmp.eq.s32.totalorder %s19, 1
    %p105 = por %p103, %p104
    %p106 = scmp.ne.s32.totalorder %s95, %s96
    %p107 = scmp.eq.s32.totalorder %s19, 0
    %p108 = por %p106, %p107
    %p109 = scmp.ne.s32.totalorder %s95, %s96
    %p110 = scmp.eq.s32.totalorder %s20, 1
    %p111 = por %p109, %p110
    %p113 = scmp.ne.s32.totalorder %s96, %s112
    %p114 = scmp.eq.s32.totalorder %s20, 0
    %p115 = por %p113, %p114
    %s117 = sadd.s32 %s116, 1
    %p120 = scmp.eq.s32.totalorder %s14, 1
    %p121 = scmp.ne.s32.totalorder %s116, %s118
    %p122 = scmp.eq.s32.totalorder %s14, 0
    %p123 = por %p121, %p122
    %p124 = scmp.ne.s32.totalorder %s116, %s118
    %p125 = scmp.eq.s32.totalorder %s19, 1
    %p126 = por %p124, %p125
    %p127 = scmp.ne.s32.totalorder %s118, %s119
    %p128 = scmp.eq.s32.totalorder %s19, 0
    %p129 = por %p127, %p128
    %p130 = scmp.ne.s32.totalorder %s118, %s119
    %p131 = scmp.eq.s32.totalorder %s20, 1
    %p132 = por %p130, %p131
    %p134 = scmp.ne.s32.totalorder %s119, %s133
    %p135 = scmp.eq.s32.totalorder %s20, 0
    %p136 = por %p134, %p135
    %s138 = sadd.s32 %s137, 1
    %p141 = scmp.eq.s32.totalorder %s14, 1
    %p142 = scmp.ne.s32.totalorder %s137, %s139
    %p143 = scmp.eq.s32.totalorder %s14, 0
    %p144 = por %p142, %p143
    %p145 = scmp.ne.s32.totalorder %s137, %s139
    %p146 = scmp.eq.s32.totalorder %s19, 1
    %p147 = por %p145, %p146
    %p148 = scmp.ne.s32.totalorder %s139, %s140
    %p149 = scmp.eq.s32.totalorder %s19, 0
    %p150 = por %p148, %p149
    %p151 = scmp.ne.s32.totalorder %s139, %s140
    %p152 = scmp.eq.s32.totalorder %s20, 1
    %p153 = por %p151, %p152
    %p155 = scmp.ne.s32.totalorder %s140, %s154
    %p156 = scmp.eq.s32.totalorder %s20, 0
    %p157 = por %p155, %p156
    %s159 = sadd.s32 %s158, 1
    %p162 = scmp.eq.s32.totalorder %s14, 1
    %p163 = scmp.ne.s32.totalorder %s158, %s160
    %p164 = scmp.eq.s32.totalorder %s14, 0
    %p165 = por %p163, %p164
    %p166 = scmp.ne.s32.totalorder %s158, %s160
    %p167 = scmp.eq.s32.totalorder %s19, 1
    %p168 = por %p166, %p167
    %p169 = scmp.ne.s32.totalorder %s160, %s161
    %p170 = scmp.eq.s32.totalorder %s19, 0
    %p171 = por %p169, %p170
    %p172 = scmp.ne.s32.totalorder %s160, %s161
    %p173 = scmp.eq.s32.totalorder %s20, 1
    %p174 = por %p172, %p173
    %p176 = scmp.ne.s32.totalorder %s161, %s175
    %p177 = scmp.eq.s32.totalorder %s20, 0
    %p178 = por %p176, %p177
    %s180 = sadd.s32 %s179, 1
    %p183 = scmp.eq.s32.totalorder %s14, 1
    %p184 = scmp.ne.s32.totalorder %s179, %s181
    %p185 = scmp.eq.s32.totalorder %s14, 0
    %p186 = por %p184, %p185
    %p187 = scmp.ne.s32.totalorder %s179, %s181
    %p188 = scmp.eq.s32.totalorder %s19, 1
    %p189 = por %p187, %p188
    %p190 = scmp.ne.s32.totalorder %s181, %s182
    %p191 = scmp.eq.s32.totalorder %s19, 0
    %p192 = por %p190, %p191
    %p193 = scmp.ne.s32.totalorder %s181, %s182
    %p194 = scmp.eq.s32.totalorder %s20, 1
    %p195 = por %p193, %p194
    %p197 = scmp.ne.s32.totalorder %s182, %s196
    %p198 = scmp.eq.s32.totalorder %s20, 0
    %p199 = por %p197, %p198
    %s200 = ssub.s32 %s14, %s21
    %p201 = scmp.eq.s32.totalorder %s200, 0
    %s203 = sadd.s32 %s202, 1
    %s204 = scalar_select %p201, %s202, %s203
    %p207 = pneg %p201
    %p208 = scmp.eq.s32.totalorder %s14, 1
    %p209 = por %p207, %p208
    %p210 = scmp.ne.s32.totalorder %s202, %s205
    %p211 = scmp.eq.s32.totalorder %s14, 0
    %p212 = por %p210, %p211
    %p213 = scmp.ne.s32.totalorder %s202, %s205
    %p214 = scmp.eq.s32.totalorder %s19, 1
    %p215 = por %p213, %p214
    %p216 = scmp.ne.s32.totalorder %s205, %s206
    %p217 = scmp.eq.s32.totalorder %s19, 0
    %p218 = por %p216, %p217
    %p219 = scmp.ne.s32.totalorder %s205, %s206
    %p220 = scmp.eq.s32.totalorder %s20, 1
    %p221 = por %p219, %p220
    %p223 = scmp.ne.s32.totalorder %s206, %s222
    %p224 = scmp.eq.s32.totalorder %s20, 0
    %p225 = por %p223, %p224
    %p226 = scmp.le.s32.totalorder 1, %s14
    %p227 = scmp.lt.s32.totalorder %s14, 3
    %p228 = pnand %p226, %p227
    %p229 = pneg %p228
    // Predicated region
    $region9: #{bert_encode.7} parent=5 // pred_check
      _
    $region10: #{bert_encode.7} parent=5 // pred_check_branch
      %231 = sbr.rel (%p228) target = $region12
    $region11: #{bert_encode.7} parent=5 // pred_region
      %s232 = ssub.s32 %s14, 1
      // Predicated region
      $region13: #{bert_encode.7} parent=11 // pred_check
        %p233 = pneg %p61
      $region14: #{bert_encode.7} parent=11 // pred_check_branch
        %235 = sbr.rel (%p233) target = $region16
      $region15: #{bert_encode.7} parent=11 // pred_region
        _
      $region16: #{bert_encode.7} parent=11 // pred_fallthru
        _
      // Predicated region
      $region17: #{bert_encode.7} parent=11 // pred_check
        %p236 = pneg %p82
      $region18: #{bert_encode.7} parent=11 // pred_check_branch
        %238 = sbr.rel (%p236) target = $region20
      $region19: #{bert_encode.7} parent=11 // pred_region
        _
      $region20: #{bert_encode.7} parent=11 // pred_fallthru
        _
      // Predicated region
      $region21: #{bert_encode.7} parent=11 // pred_check
        %p239 = pneg %p129
      $region22: #{bert_encode.7} parent=11 // pred_check_branch
        %241 = sbr.rel (%p239) target = $region24
      $region23: #{bert_encode.7} parent=11 // pred_region
        _
      $region24: #{bert_encode.7} parent=11 // pred_fallthru
        _
      // Predicated region
      $region25: #{bert_encode.7} parent=11 // pred_check
        %p242 = pneg %p150
      $region26: #{bert_encode.7} parent=11 // pred_check_branch
        %244 = sbr.rel (%p242) target = $region28
      $region27: #{bert_encode.7} parent=11 // pred_region
        _
      $region28: #{bert_encode.7} parent=11 // pred_fallthru
        _
      // Predicated region
      $region29: #{bert_encode.7} parent=11 // pred_check
        %p245 = pneg %p171
      $region30: #{bert_encode.7} parent=11 // pred_check_branch
        %247 = sbr.rel (%p245) target = $region32
      $region31: #{bert_encode.7} parent=11 // pred_region
        _
      $region32: #{bert_encode.7} parent=11 // pred_fallthru
        _
      // Predicated region
      $region33: #{bert_encode.7} parent=11 // pred_check
        %p248 = pneg %p192
      $region34: #{bert_encode.7} parent=11 // pred_check_branch
        %250 = sbr.rel (%p248) target = $region36
      $region35: #{bert_encode.7} parent=11 // pred_region
        _
      $region36: #{bert_encode.7} parent=11 // pred_fallthru
        _
    $region12: #{bert_encode.7} parent=5 // pred_fallthru
      _
    %p251 = scmp.lt.s32.totalorder %s14, 2
    // Predicated region
    $region37: #{bert_encode.7} parent=5 // pred_check
      %p252 = pneg %p251
    $region38: #{bert_encode.7} parent=5 // pred_check_branch
      %254 = sbr.rel (%p252) target = $region40
    $region39: #{bert_encode.7} parent=5 // pred_region
      // Predicated region
      $region41: #{bert_encode.7} parent=39 // pred_check
        %p255 = pneg %p34
      $region42: #{bert_encode.7} parent=39 // pred_check_branch
        %257 = sbr.rel (%p255) target = $region44
      $region43: #{bert_encode.7} parent=39 // pred_region
        %p258 = scmp.lt.s32.totalorder %s14, 1
        %s259 = scalar_select %p258, %s14, 1
        %s260 = smul.addr %s259, 4
        %s261 = scalar_lea.vmem %s0, %s260
      $region44: #{bert_encode.7} parent=39 // pred_fallthru
        _
      // Predicated region
      $region45: #{bert_encode.7} parent=39 // pred_check
        %p262 = pneg %p102
      $region46: #{bert_encode.7} parent=39 // pred_check_branch
        %264 = sbr.rel (%p262) target = $region48
      $region47: #{bert_encode.7} parent=39 // pred_region
        %p265 = scmp.lt.s32.totalorder %s14, 1
        %s266 = scalar_select %p265, %s14, 1
        %s267 = scalar_lea.vmem %s3, %s266
      $region48: #{bert_encode.7} parent=39 // pred_fallthru
        _
    $region40: #{bert_encode.7} parent=5 // pred_fallthru
      _
    %p268 = scmp.le.s32.totalorder 1, %s14
    %p269 = scmp.lt.s32.totalorder %s14, 3
    %p270 = pnand %p268, %p269
    %p271 = pneg %p270
    // Predicated region
    $region49: #{bert_encode.7} parent=5 // pred_check
      _
    $region50: #{bert_encode.7} parent=5 // pred_check_branch
      %273 = sbr.rel (%p270) target = $region52
    $region51: #{bert_encode.7} parent=5 // pred_region
      %s274 = ssub.s32 %s14, 1
      %p275 = scmp.lt.s32.totalorder %s19, 1
      %s276 = scalar_select %p275, %s19, 1
      %s277 = smul.addr %s276, 4
      %s278 = scalar_lea.vmem %s0, %s277
      %p279 = pneg %p40
      %p280 = pneg %p37
      %p281 = pneg %p61
      %p282 = pneg %p58
      %p283 = pneg %p82
      %p284 = pneg %p79
      %p285 = scmp.lt.s32.totalorder %s19, 1
      %s286 = scalar_select %p285, %s19, 1
      %s287 = scalar_lea.vmem %s3, %s286
      %p288 = pneg %p108
      %p289 = pneg %p105
      %p290 = pneg %p129
      %p291 = pneg %p126
      %p292 = pneg %p150
      %p293 = pneg %p147
      %p294 = pneg %p171
      %p295 = pneg %p168
      %p296 = pneg %p192
      %p297 = pneg %p189
      %p298 = pneg %p218
      %p299 = pneg %p215
      %p300 = scmp.lt.s32.totalorder %s19, 1
      %s301 = scalar_select %p300, %s19, 1
      %s302 = smul.addr %s301, 4
      %s303 = scalar_lea.vmem %s8, %s302
      %p304 = scmp.lt.s32.totalorder %s19, 1
      %s305 = scalar_select %p304, %s19, 1
      %s306 = smul.addr %s305, 4
      %s307 = scalar_lea.vmem %s0, %s306
      %p308 = scmp.lt.s32.totalorder %s19, 1
      %s309 = scalar_select %p308, %s19, 1
      %s310 = scalar_lea.vmem %s3, %s309
      %p311 = scmp.lt.s32.totalorder %s19, 1
      %s312 = scalar_select %p311, %s19, 1
      %s313 = smul.addr %s312, 4
      %s314 = scalar_lea.vmem %s8, %s313
      %v316 = vld [vmem:[%s307] sm:$0xf]
      %v317 = vld [vmem:[%s310] sm:$0x1]
      %v318 = vld [vmem:[%s1] sm:$0xff]
      %v319 = vld [vmem:[%s1 + $0x8] sm:$0xf]
      %v320 = vld [vmem:[%s1 + $0xc] sm:$0xff]
      %v321 = vld [vmem:[%s1 + $0x14] sm:$0xf]
      %v322 = vld [vmem:[%s1 + $0x18] sm:$0xff]
      %v323 = vld [vmem:[%s1 + $0x20] sm:$0xf]
      %v324 = vld [vmem:[%s1 + $0x24] sm:$0xff]
      %v325 = vld [vmem:[%s1 + $0x2c] sm:$0xf]
      %v326 = vld [vmem:[%s1 + $0x30] sm:$0xff]
      %v327 = vld [vmem:[%s1 + $0x38] sm:$0xf]
      %v328 = vld [vmem:[%s1 + $0x3c] sm:$0xff]
      %v329 = vld [vmem:[%s1 + $0x44] sm:$0xf]
      %v330 = vld [vmem:[%s1 + $0x48] sm:$0xff]
      %v331 = vld [vmem:[%s1 + $0x50] sm:$0xf]
      %v332 = vld [vmem:[%s1 + $0x54] sm:$0xff]
      %v333 = vld [vmem:[%s1 + $0x5c] sm:$0xf]
      %v334 = vld [vmem:[%s1 + $0x60] sm:$0xff]
      %v335 = vld [vmem:[%s1 + $0x68] sm:$0xf]
      %v336 = vld [vmem:[%s1 + $0x6c] sm:$0xff]
      %v337 = vld [vmem:[%s1 + $0x74] sm:$0xf]
      %v338 = vld [vmem:[%s1 + $0x78] sm:$0xff]
      %v339 = vld [vmem:[%s1 + $0x80] sm:$0xf]
      %v340 = vld [vmem:[%s1 + $0x84] sm:$0xff]
      %v341 = vld [vmem:[%s1 + $0x8c] sm:$0xf]
      %v342 = vld [vmem:[%s1 + $0x90] sm:$0xff]
      %v343 = vld [vmem:[%s1 + $0x98] sm:$0xf]
      %v344 = vld [vmem:[%s1 + $0x9c] sm:$0xff]
      %v345 = vld [vmem:[%s1 + $0xa4] sm:$0xf]
      %v346 = vld [vmem:[%s1 + $0xa8] sm:$0xff]
      %v347 = vld [vmem:[%s1 + $0xb0] sm:$0xf]
      %v348 = vld [vmem:[%s1 + $0xb4] sm:$0xff]
      %v349 = vld [vmem:[%s1 + $0xbc] sm:$0xf]
      %v350 = vld [vmem:[%s2] sm:$0x7]
      %v352 = vlaneseq
      %v353 = vshrl.u32 %v352, 7
      %v354 = vsub.s32 0, %v353
      %v355 = vrot.slane %v350, %v354
      %v356 = vlaneseq
      %v357 = vshrl.u32 %v356, 7
      %v358 = vsub.s32 1, %v357
      %v359 = vrot.slane %v350, %v358
      %v360 = vlaneseq
      %v361 = vshrl.u32 %v360, 7
      %v362 = vsub.s32 2, %v361
      %v363 = vrot.slane %v350, %v362
      %v399 = vunpack.c.l.b16 %v318
      %v400 = vunpack.c.h.b16 %v318
      %v401 = vunpack.c.l.b16 %v319
      %v402 = vunpack.c.l.b16 %v320
      %v403 = vunpack.c.h.b16 %v320
      %v404 = vunpack.c.l.b16 %v321
      %v405 = vunpack.c.l.b16 %v322
      %v406 = vunpack.c.h.b16 %v322
      %v407 = vunpack.c.l.b16 %v323
      %v408 = vunpack.c.l.b16 %v324
      %v409 = vunpack.c.h.b16 %v324
      %v410 = vunpack.c.l.b16 %v325
      %v411 = vunpack.c.l.b16 %v326
      %v412 = vunpack.c.h.b16 %v326
      %v413 = vunpack.c.l.b16 %v327
      %v414 = vunpack.c.l.b16 %v328
      %v415 = vunpack.c.h.b16 %v328
      %v416 = vunpack.c.l.b16 %v329
      %v417 = vunpack.c.l.b16 %v330
      %v418 = vunpack.c.h.b16 %v330
      %v419 = vunpack.c.l.b16 %v331
      %v420 = vunpack.c.l.b16 %v332
      %v421 = vunpack.c.h.b16 %v332
      %v422 = vunpack.c.l.b16 %v333
      %v423 = vunpack.c.l.b16 %v334
      %v424 = vunpack.c.h.b16 %v334
      %v425 = vunpack.c.l.b16 %v335
      %v426 = vunpack.c.l.b16 %v336
      %v427 = vunpack.c.h.b16 %v336
      %v428 = vunpack.c.l.b16 %v337
      %v429 = vunpack.c.l.b16 %v338
      %v430 = vunpack.c.h.b16 %v338
      %v431 = vunpack.c.l.b16 %v339
      %v432 = vunpack.c.l.b16 %v340
      %v433 = vunpack.c.h.b16 %v340
      %v434 = vunpack.c.l.b16 %v341
      %v435 = vunpack.c.l.b16 %v342
      %v436 = vunpack.c.h.b16 %v342
      %v437 = vunpack.c.l.b16 %v343
      %v438 = vunpack.c.l.b16 %v344
      %v439 = vunpack.c.h.b16 %v344
      %v440 = vunpack.c.l.b16 %v345
      %v441 = vunpack.c.l.b16 %v346
      %v442 = vunpack.c.h.b16 %v346
      %v443 = vunpack.c.l.b16 %v347
      %v444 = vunpack.c.l.b16 %v348
      %v445 = vunpack.c.h.b16 %v348
      %v446 = vunpack.c.l.b16 %v349
      %v447 = vpack.c.b16 %v402, %v399
      %v448 = vpack.c.b16 %v403, %v400
      %v449 = vpack.c.b16 %v404, %v401
      %v450 = vpack.c.b16 %v408, %v405
      %v451 = vpack.c.b16 %v409, %v406
      %v452 = vpack.c.b16 %v410, %v407
      %v453 = vpack.c.b16 %v414, %v411
      %v454 = vpack.c.b16 %v415, %v412
      %v455 = vpack.c.b16 %v416, %v413
      %v456 = vpack.c.b16 %v420, %v417
      %v457 = vpack.c.b16 %v421, %v418
      %v458 = vpack.c.b16 %v422, %v419
      %v459 = vpack.c.b16 %v426, %v423
      %v460 = vpack.c.b16 %v427, %v424
      %v461 = vpack.c.b16 %v428, %v425
      %v462 = vpack.c.b16 %v432, %v429
      %v463 = vpack.c.b16 %v433, %v430
      %v464 = vpack.c.b16 %v434, %v431
      %v465 = vpack.c.b16 %v438, %v435
      %v466 = vpack.c.b16 %v439, %v436
      %v467 = vpack.c.b16 %v440, %v437
      %v468 = vpack.c.b16 %v444, %v441
      %v469 = vpack.c.b16 %v445, %v442
      %v470 = vpack.c.b16 %v446, %v443
      %495 = vmatprep.subr.bf16.mxu0 %v448
      %496 = vmatpush1.bf16.msra.mxu0 %v447
      %497 = vmatprep.subr.bf16.mxu0 %v451
      %498 = vmatpush1.bf16.msra.mxu0 %v450
      %499 = vmatprep.subr.bf16.mxu0 %v454
      %500 = vmatpush1.bf16.msra.mxu0 %v453
      %501 = vmatprep.subr.bf16.mxu0 %v457
      %502 = vmatpush1.bf16.msra.mxu0 %v456
      %503 = vmatprep.subr.bf16.mxu0 %v460
      %504 = vmatpush1.bf16.msra.mxu0 %v459
      %505 = vmatprep.subr.bf16.mxu0 %v463
      %506 = vmatpush1.bf16.msra.mxu0 %v462
      %507 = vmatprep.subr.bf16.mxu0 %v466
      %508 = vmatpush1.bf16.msra.mxu0 %v465
      %509 = vmatprep.subr.bf16.mxu0 %v469
      %510 = vmatpush1.bf16.msra.mxu0 %v468
      %511 = vmatprep.subr.bf16.mxu0 0
      %512 = vmatpush1.bf16.msra.mxu0 0
      %513 = vmatprep.subr.bf16.mxu0 0
      %514 = vmatpush1.bf16.msra.mxu0 0
      %515 = vmatprep.subr.bf16.mxu0 0
      %516 = vmatpush1.bf16.msra.mxu0 0
      %517 = vmatprep.subr.bf16.mxu0 0
      %518 = vmatpush1.bf16.msra.mxu0 0
      %519 = vmatprep.subr.bf16.mxu0 0
      %520 = vmatpush1.bf16.msra.mxu0 0
      %521 = vmatprep.subr.bf16.mxu0 0
      %522 = vmatpush1.bf16.msra.mxu0 0
      %523 = vmatprep.subr.bf16.mxu0 0
      %524 = vmatpush1.bf16.msra.mxu0 0
      %525 = vmatprep.subr.bf16.mxu0 0
      %526 = vmatpush1.bf16.msra.mxu0 0
      %527 = vmatprep.mubr.bf16.mxu0 0
      %528 = vmatmul.mubr.bf16.gmra.mrb[0].mxu0 %v316
      %v529 = vpop.f32.mrb[0].mxu0
      %v530 = vadd.f32 %v355, %v529
      %v531 = vpop.f32.mrb[0].mxu0
      %v532 = vadd.f32 %v359, %v531
      %v533 = vpop.f32.mrb[0].mxu0
      %v534 = vpop.f32.mrb[0].mxu0
      %535 = vdwg.mxu0
      %536 = vmatprep.subr.bf16.mxu0 0
      %537 = vmatpush1.bf16.msra.mxu0 %v449
      %538 = vmatprep.subr.bf16.mxu0 0
      %539 = vmatpush1.bf16.msra.mxu0 %v452
      %540 = vmatprep.subr.bf16.mxu0 0
      %541 = vmatpush1.bf16.msra.mxu0 %v455
      %542 = vmatprep.subr.bf16.mxu0 0
      %543 = vmatpush1.bf16.msra.mxu0 %v458
      %544 = vmatprep.subr.bf16.mxu0 0
      %545 = vmatpush1.bf16.msra.mxu0 %v461
      %546 = vmatprep.subr.bf16.mxu0 0
      %547 = vmatpush1.bf16.msra.mxu0 %v464
      %548 = vmatprep.subr.bf16.mxu0 0
      %549 = vmatpush1.bf16.msra.mxu0 %v467
      %550 = vmatprep.subr.bf16.mxu0 0
      %551 = vmatpush1.bf16.msra.mxu0 %v470
      %552 = vmatprep.subr.bf16.mxu0 0
      %553 = vmatpush1.bf16.msra.mxu0 0
      %554 = vmatprep.subr.bf16.mxu0 0
      %555 = vmatpush1.bf16.msra.mxu0 0
      %556 = vmatprep.subr.bf16.mxu0 0
      %557 = vmatpush1.bf16.msra.mxu0 0
      %558 = vmatprep.subr.bf16.mxu0 0
      %559 = vmatpush1.bf16.msra.mxu0 0
      %560 = vmatprep.subr.bf16.mxu0 0
      %561 = vmatpush1.bf16.msra.mxu0 0
      %562 = vmatprep.subr.bf16.mxu0 0
      %563 = vmatpush1.bf16.msra.mxu0 0
      %564 = vmatprep.subr.bf16.mxu0 0
      %565 = vmatpush1.bf16.msra.mxu0 0
      %566 = vmatprep.subr.bf16.mxu0 0
      %567 = vmatpush1.bf16.msra.mxu0 0
      %568 = vmatprep.mubr.bf16.mxu0 0
      %569 = vmatmul.mubr.bf16.gmra.mrb[0].mxu0 %v316
      %v570 = vpop.f32.mrb[0].mxu0
      %v571 = vadd.f32 %v363, %v570
      %v572 = vpop.f32.mrb[0].mxu0
      %v573 = vpop.f32.mrb[0].mxu0
      %v574 = vpop.f32.mrb[0].mxu0
      %575 = vdwg.mxu0
      %v576 = vpack.c.bf16 %v530, %v530
      %v577 = vpack.c.bf16 %v532, %v532
      %v578 = vpack.c.bf16 %v571, %v571
      %vm579 = vcmask 523264
      %v581 = vsel %vm579, %v576, 0
      %v584 = vsel %vm579, %v577, 0
      %586 = vmatprep.subr.bf16.mxu0 0
      %587 = vmatpush1.bf16.xpose.msra.mxu0 %v584
      %588 = vmatprep.subr.bf16.mxu0 0
      %589 = vmatpush1.bf16.xpose.msra.mxu0 0
      %590 = vmatprep.subr.bf16.mxu0 0
      %591 = vmatpush1.bf16.xpose.msra.mxu0 0
      %592 = vmatprep.subr.bf16.mxu0 0
      %593 = vmatpush1.bf16.xpose.msra.mxu0 0
      %594 = vmatprep.subr.bf16.mxu0 0
      %595 = vmatpush1.bf16.xpose.msra.mxu0 0
      %596 = vmatprep.subr.bf16.mxu0 0
      %597 = vmatpush1.bf16.xpose.msra.mxu0 0
      %598 = vmatprep.subr.bf16.mxu0 0
      %599 = vmatpush1.bf16.xpose.msra.mxu0 0
      %600 = vmatprep.subr.bf16.mxu0 0
      %601 = vmatpush1.bf16.xpose.msra.mxu0 0
      %602 = vmatprep.subr.bf16.mxu0 0
      %603 = vmatpush1.bf16.xpose.msra.mxu0 0
      %604 = vmatprep.subr.bf16.mxu0 0
      %605 = vmatpush1.bf16.xpose.msra.mxu0 0
      %606 = vmatprep.subr.bf16.mxu0 0
      %607 = vmatpush1.bf16.xpose.msra.mxu0 0
      %608 = vmatprep.subr.bf16.mxu0 0
      %609 = vmatpush1.bf16.xpose.msra.mxu0 0
      %610 = vmatprep.subr.bf16.mxu0 0
      %611 = vmatpush1.bf16.xpose.msra.mxu0 0
      %612 = vmatprep.subr.bf16.mxu0 0
      %613 = vmatpush1.bf16.xpose.msra.mxu0 0
      %614 = vmatprep.subr.bf16.mxu0 0
      %615 = vmatpush1.bf16.xpose.msra.mxu0 0
      %616 = vmatprep.subr.bf16.mxu0 0
      %617 = vmatpush1.bf16.xpose.msra.mxu0 0
      %618 = vmatprep.mubr.bf16.mxu0 0
      %619 = vmatmul.mubr.bf16.gmra.mrb[0].mxu0 %v581
      %v620 = vpop.f32.mrb[0].mxu0
      %v621 = vadd.f32 0.0, %v620
      %v622 = vpop.f32.mrb[0].mxu0
      %v623 = vpop.f32.mrb[0].mxu0
      %v624 = vpop.f32.mrb[0].mxu0
      %625 = vdwg.mxu0
      %v626 = vmul.f32 %v621, 0.125
      %v628 = vlaneseq
      %v629 = vshrl.u32 %v628, 7
      %v630 = vsub.s32 0, %v629
      %v631 = vrot.slane %v317, %v630
      %v633 = vadd.f32 %v626, %v631
      %vm634 = vcmask 64512
      %v635 = vsel %vm634, %v633, -inf
      %636 = vmax.xlane.f32.xlu0 %v635
      %v637 = vpop.xlane.xlu0 %636
      %v638 = vsub.f32 %v633, %v637
      %v639 = vmul.f32 %v638, 1.442695
      %v640 = vpow.pop %v639
      %v641 = vsel %vm634, %v640, 0.0
      %642 = vadd.xlane.f32.xlu0 %v641
      %v643 = vpop.xlane.xlu0 %642
      %v644 = vrcp.pop %v643
      %v645 = vmul.f32 %v640, %v644
      %v646 = vpack.c.bf16 %v645, %v645
      %v648 = vsel %vm634, %v646, 0
      %vm650 = vcmask 1043456
      %v652 = vsel %vm650, %v578, 0
      %654 = vmatprep.subr.bf16.mxu0 0
      %655 = vmatpush1.bf16.msra.mxu0 %v652
      %656 = vmatprep.subr.bf16.mxu0 0
      %657 = vmatpush1.bf16.msra.mxu0 0
      %658 = vmatprep.subr.bf16.mxu0 0
      %659 = vmatpush1.bf16.msra.mxu0 0
      %660 = vmatprep.subr.bf16.mxu0 0
      %661 = vmatpush1.bf16.msra.mxu0 0
      %662 = vmatprep.subr.bf16.mxu0 0
      %663 = vmatpush1.bf16.msra.mxu0 0
      %664 = vmatprep.subr.bf16.mxu0 0
      %665 = vmatpush1.bf16.msra.mxu0 0
      %666 = vmatprep.subr.bf16.mxu0 0
      %667 = vmatpush1.bf16.msra.mxu0 0
      %668 = vmatprep.subr.bf16.mxu0 0
      %669 = vmatpush1.bf16.msra.mxu0 0
      %670 = vmatprep.subr.bf16.mxu0 0
      %671 = vmatpush1.bf16.msra.mxu0 0
      %672 = vmatprep.subr.bf16.mxu0 0
      %673 = vmatpush1.bf16.msra.mxu0 0
      %674 = vmatprep.subr.bf16.mxu0 0
      %675 = vmatpush1.bf16.msra.mxu0 0
      %676 = vmatprep.subr.bf16.mxu0 0
      %677 = vmatpush1.bf16.msra.mxu0 0
      %678 = vmatprep.subr.bf16.mxu0 0
      %679 = vmatpush1.bf16.msra.mxu0 0
      %680 = vmatprep.subr.bf16.mxu0 0
      %681 = vmatpush1.bf16.msra.mxu0 0
      %682 = vmatprep.subr.bf16.mxu0 0
      %683 = vmatpush1.bf16.msra.mxu0 0
      %684 = vmatprep.subr.bf16.mxu0 0
      %685 = vmatpush1.bf16.msra.mxu0 0
      %686 = vmatprep.mubr.bf16.mxu0 0
      %687 = vmatmul.mubr.bf16.gmra.mrb[0].mxu0 %v648
      %v688 = vpop.f32.mrb[0].mxu0
      %v689 = vadd.f32 0.0, %v688
      %v690 = vpop.f32.mrb[0].mxu0
      %v691 = vpop.f32.mrb[0].mxu0
      %v692 = vpop.f32.mrb[0].mxu0
      %693 = vdwg.mxu0
      %v694 = vpack.c.bf16 %v689, %v689
      %v695 = vld [vmem:[%s4] sm:$0xf]
      %v696 = vld [vmem:[%s4 + $0x4] sm:$0xf]
      %v697 = vld [vmem:[%s4 + $0x8] sm:$0xf]
      %v698 = vld [vmem:[%s4 + $0xc] sm:$0xf]
      %v699 = vld [vmem:[%s4 + $0x10] sm:$0xf]
      %v700 = vld [vmem:[%s4 + $0x14] sm:$0xf]
      %v701 = vld [vmem:[%s4 + $0x18] sm:$0xf]
      %v702 = vld [vmem:[%s4 + $0x1c] sm:$0xf]
      %704 = vrot.lane.b32.xlu0 %v576, 64
      %v705 = vpop.permute.xlu0 %704
      %707 = vrot.lane.b32.xlu0 %v577, 64
      %v708 = vpop.permute.xlu0 %707
      %v710 = vsel %vm579, %v705, 0
      %v713 = vsel %vm579, %v708, 0
      %715 = vmatprep.subr.bf16.mxu0 0
      %716 = vmatpush1.bf16.xpose.msra.mxu0 %v713
      %717 = vmatprep.subr.bf16.mxu0 0
      %718 = vmatpush1.bf16.xpose.msra.mxu0 0
      %719 = vmatprep.subr.bf16.mxu0 0
      %720 = vmatpush1.bf16.xpose.msra.mxu0 0
      %721 = vmatprep.subr.bf16.mxu0 0
      %722 = vmatpush1.bf16.xpose.msra.mxu0 0
      %723 = vmatprep.subr.bf16.mxu0 0
      %724 = vmatpush1.bf16.xpose.msra.mxu0 0
      %725 = vmatprep.subr.bf16.mxu0 0
      %726 = vmatpush1.bf16.xpose.msra.mxu0 0
      %727 = vmatprep.subr.bf16.mxu0 0
      %728 = vmatpush1.bf16.xpose.msra.mxu0 0
      %729 = vmatprep.subr.bf16.mxu0 0
      %730 = vmatpush1.bf16.xpose.msra.mxu0 0
      %731 = vmatprep.subr.bf16.mxu0 0
      %732 = vmatpush1.bf16.xpose.msra.mxu0 0
      %733 = vmatprep.subr.bf16.mxu0 0
      %734 = vmatpush1.bf16.xpose.msra.mxu0 0
      %735 = vmatprep.subr.bf16.mxu0 0
      %736 = vmatpush1.bf16.xpose.msra.mxu0 0
      %737 = vmatprep.subr.bf16.mxu0 0
      %738 = vmatpush1.bf16.xpose.msra.mxu0 0
      %739 = vmatprep.subr.bf16.mxu0 0
      %740 = vmatpush1.bf16.xpose.msra.mxu0 0
      %741 = vmatprep.subr.bf16.mxu0 0
      %742 = vmatpush1.bf16.xpose.msra.mxu0 0
      %743 = vmatprep.subr.bf16.mxu0 0
      %744 = vmatpush1.bf16.xpose.msra.mxu0 0
      %745 = vmatprep.subr.bf16.mxu0 0
      %746 = vmatpush1.bf16.xpose.msra.mxu0 0
      %747 = vmatprep.mubr.bf16.mxu0 0
      %748 = vmatmul.mubr.bf16.gmra.mrb[0].mxu0 %v710
      %v749 = vpop.f32.mrb[0].mxu0
      %v750 = vadd.f32 0.0, %v749
      %v751 = vpop.f32.mrb[0].mxu0
      %v752 = vpop.f32.mrb[0].mxu0
      %v753 = vpop.f32.mrb[0].mxu0
      %754 = vdwg.mxu0
      %v755 = vmul.f32 %v750, 0.125
      %v756 = vadd.f32 %v755, %v631
      %v757 = vsel %vm634, %v756, -inf
      %758 = vmax.xlane.f32.xlu0 %v757
      %v759 = vpop.xlane.xlu0 %758
      %v760 = vsub.f32 %v756, %v759
      %v761 = vmul.f32 %v760, 1.442695
      %v762 = vpow.pop %v761
      %v763 = vsel %vm634, %v762, 0.0
      %764 = vadd.xlane.f32.xlu0 %v763
      %v765 = vpop.xlane.xlu0 %764
      %v766 = vrcp.pop %v765
      %v767 = vmul.f32 %v762, %v766
      %v768 = vpack.c.bf16 %v767, %v767
      %770 = vrot.lane.b32.xlu0 %v578, 64
      %v771 = vpop.permute.xlu0 %770
      %v773 = vsel %vm634, %v768, 0
      %v776 = vsel %vm650, %v771, 0
      %778 = vmatprep.subr.bf16.mxu0 0
      %779 = vmatpush1.bf16.msra.mxu0 %v776
      %780 = vmatprep.subr.bf16.mxu0 0
      %781 = vmatpush1.bf16.msra.mxu0 0
      %782 = vmatprep.subr.bf16.mxu0 0
      %783 = vmatpush1.bf16.msra.mxu0 0
      %784 = vmatprep.subr.bf16.mxu0 0
      %785 = vmatpush1.bf16.msra.mxu0 0
      %786 = vmatprep.subr.bf16.mxu0 0
      %787 = vmatpush1.bf16.msra.mxu0 0
      %788 = vmatprep.subr.bf16.mxu0 0
      %789 = vmatpush1.bf16.msra.mxu0 0
      %790 = vmatprep.subr.bf16.mxu0 0
      %791 = vmatpush1.bf16.msra.mxu0 0
      %792 = vmatprep.subr.bf16.mxu0 0
      %793 = vmatpush1.bf16.msra.mxu0 0
      %794 = vmatprep.subr.bf16.mxu0 0
      %795 = vmatpush1.bf16.msra.mxu0 0
      %796 = vmatprep.subr.bf16.mxu0 0
      %797 = vmatpush1.bf16.msra.mxu0 0
      %798 = vmatprep.subr.bf16.mxu0 0
      %799 = vmatpush1.bf16.msra.mxu0 0
      %800 = vmatprep.subr.bf16.mxu0 0
      %801 = vmatpush1.bf16.msra.mxu0 0
      %802 = vmatprep.subr.bf16.mxu0 0
      %803 = vmatpush1.bf16.msra.mxu0 0
      %804 = vmatprep.subr.bf16.mxu0 0
      %805 = vmatpush1.bf16.msra.mxu0 0
      %806 = vmatprep.subr.bf16.mxu0 0
      %807 = vmatpush1.bf16.msra.mxu0 0
      %808 = vmatprep.subr.bf16.mxu0 0
      %809 = vmatpush1.bf16.msra.mxu0 0
      %810 = vmatprep.mubr.bf16.mxu0 0
      %811 = vmatmul.mubr.bf16.gmra.mrb[0].mxu0 %v773
      %v812 = vpop.f32.mrb[0].mxu0
      %v813 = vadd.f32 0.0, %v812
      %v814 = vpop.f32.mrb[0].mxu0
      %v815 = vpop.f32.mrb[0].mxu0
      %v816 = vpop.f32.mrb[0].mxu0
      %817 = vdwg.mxu0
      %v818 = vpack.c.bf16 %v813, %v813
      %v819 = vld [vmem:[%s4 + $0x20] sm:$0xf]
      %v820 = vld [vmem:[%s4 + $0x24] sm:$0xf]
      %v821 = vld [vmem:[%s4 + $0x28] sm:$0xf]
      %v822 = vld [vmem:[%s4 + $0x2c] sm:$0xf]
      %v823 = vld [vmem:[%s4 + $0x30] sm:$0xf]
      %v824 = vld [vmem:[%s4 + $0x34] sm:$0xf]
      %v825 = vld [vmem:[%s4 + $0x38] sm:$0xf]
      %v826 = vld [vmem:[%s4 + $0x3c] sm:$0xf]
      %v835 = vunpack.c.l.b16 %v819
      %v836 = vunpack.c.l.b16 %v820
      %v837 = vunpack.c.l.b16 %v821
      %v838 = vunpack.c.l.b16 %v822
      %v839 = vunpack.c.l.b16 %v823
      %v840 = vunpack.c.l.b16 %v824
      %v841 = vunpack.c.l.b16 %v825
      %v842 = vunpack.c.l.b16 %v826
      %v843 = vpack.c.b16 %v836, %v835
      %v844 = vpack.c.b16 %v838, %v837
      %v845 = vpack.c.b16 %v840, %v839
      %v846 = vpack.c.b16 %v842, %v841
      %v852 = vsel %vm579, %v818, 0
      %854 = vmatprep.subr.bf16.mxu0 0
      %855 = vmatpush1.bf16.msra.mxu0 %v843
      %856 = vmatprep.subr.bf16.mxu0 0
      %857 = vmatpush1.bf16.msra.mxu0 %v844
      %858 = vmatprep.subr.bf16.mxu0 0
      %859 = vmatpush1.bf16.msra.mxu0 %v845
      %860 = vmatprep.subr.bf16.mxu0 0
      %861 = vmatpush1.bf16.msra.mxu0 %v846
      %862 = vmatprep.subr.bf16.mxu0 0
      %863 = vmatpush1.bf16.msra.mxu0 0
      %864 = vmatprep.subr.bf16.mxu0 0
      %865 = vmatpush1.bf16.msra.mxu0 0
      %866 = vmatprep.subr.bf16.mxu0 0
      %867 = vmatpush1.bf16.msra.mxu0 0
      %868 = vmatprep.subr.bf16.mxu0 0
      %869 = vmatpush1.bf16.msra.mxu0 0
      %870 = vmatprep.subr.bf16.mxu0 0
      %871 = vmatpush1.bf16.msra.mxu0 0
      %872 = vmatprep.subr.bf16.mxu0 0
      %873 = vmatpush1.bf16.msra.mxu0 0
      %874 = vmatprep.subr.bf16.mxu0 0
      %875 = vmatpush1.bf16.msra.mxu0 0
      %876 = vmatprep.subr.bf16.mxu0 0
      %877 = vmatpush1.bf16.msra.mxu0 0
      %878 = vmatprep.subr.bf16.mxu0 0
      %879 = vmatpush1.bf16.msra.mxu0 0
      %880 = vmatprep.subr.bf16.mxu0 0
      %881 = vmatpush1.bf16.msra.mxu0 0
      %882 = vmatprep.subr.bf16.mxu0 0
      %883 = vmatpush1.bf16.msra.mxu0 0
      %884 = vmatprep.subr.bf16.mxu0 0
      %885 = vmatpush1.bf16.msra.mxu0 0
      %886 = vmatprep.mubr.bf16.mxu0 0
      %887 = vmatmul.mubr.bf16.gmra.mrb[0].mxu0 %v852
      %v888 = vpop.f32.mrb[0].mxu0
      %v889 = vadd.f32 0.0, %v888
      %v890 = vpop.f32.mrb[0].mxu0
      %v891 = vpop.f32.mrb[0].mxu0
      %v892 = vpop.f32.mrb[0].mxu0
      %893 = vdwg.mxu0
      %v902 = vunpack.c.l.b16 %v695
      %v903 = vunpack.c.l.b16 %v696
      %v904 = vunpack.c.l.b16 %v697
      %v905 = vunpack.c.l.b16 %v698
      %v906 = vunpack.c.l.b16 %v699
      %v907 = vunpack.c.l.b16 %v700
      %v908 = vunpack.c.l.b16 %v701
      %v909 = vunpack.c.l.b16 %v702
      %v910 = vpack.c.b16 %v903, %v902
      %v911 = vpack.c.b16 %v905, %v904
      %v912 = vpack.c.b16 %v907, %v906
      %v913 = vpack.c.b16 %v909, %v908
      %v919 = vsel %vm579, %v694, 0
      %921 = vmatprep.subr.bf16.mxu0 0
      %922 = vmatpush1.bf16.msra.mxu0 %v910
      %923 = vmatprep.subr.bf16.mxu0 0
      %924 = vmatpush1.bf16.msra.mxu0 %v911
      %925 = vmatprep.subr.bf16.mxu0 0
      %926 = vmatpush1.bf16.msra.mxu0 %v912
      %927 = vmatprep.subr.bf16.mxu0 0
      %928 = vmatpush1.bf16.msra.mxu0 %v913
      %929 = vmatprep.subr.bf16.mxu0 0
      %930 = vmatpush1.bf16.msra.mxu0 0
      %931 = vmatprep.subr.bf16.mxu0 0
      %932 = vmatpush1.bf16.msra.mxu0 0
      %933 = vmatprep.subr.bf16.mxu0 0
      %934 = vmatpush1.bf16.msra.mxu0 0
      %935 = vmatprep.subr.bf16.mxu0 0
      %936 = vmatpush1.bf16.msra.mxu0 0
      %937 = vmatprep.subr.bf16.mxu0 0
      %938 = vmatpush1.bf16.msra.mxu0 0
      %939 = vmatprep.subr.bf16.mxu0 0
      %940 = vmatpush1.bf16.msra.mxu0 0
      %941 = vmatprep.subr.bf16.mxu0 0
      %942 = vmatpush1.bf16.msra.mxu0 0
      %943 = vmatprep.subr.bf16.mxu0 0
      %944 = vmatpush1.bf16.msra.mxu0 0
      %945 = vmatprep.subr.bf16.mxu0 0
      %946 = vmatpush1.bf16.msra.mxu0 0
      %947 = vmatprep.subr.bf16.mxu0 0
      %948 = vmatpush1.bf16.msra.mxu0 0
      %949 = vmatprep.subr.bf16.mxu0 0
      %950 = vmatpush1.bf16.msra.mxu0 0
      %951 = vmatprep.subr.bf16.mxu0 0
      %952 = vmatpush1.bf16.msra.mxu0 0
      %953 = vmatprep.mubr.bf16.mxu0 0
      %954 = vmatmul.mubr.bf16.gmra.mrb[0].mxu0 %v919
      %v955 = vpop.f32.mrb[0].mxu0
      %v956 = vadd.f32 %v889, %v955
      %v957 = vpop.f32.mrb[0].mxu0
      %v958 = vpop.f32.mrb[0].mxu0
      %v959 = vpop.f32.mrb[0].mxu0
      %960 = vdwg.mxu0
      %v961 = vld [vmem:[%s5] sm:$0x1]
      %v963 = vlaneseq
      %v964 = vshrl.u32 %v963, 7
      %v965 = vsub.s32 0, %v964
      %v966 = vrot.slane %v961, %v965
      %v968 = vadd.f32 %v956, %v966
      %v969 = vunpack.c.l.bf16 %v316
      %v970 = vadd.f32 %v968, %v969
      %v971 = vld [vmem:[%s6] sm:$0x1]
      %v972 = vld [vmem:[%s7] sm:$0x1]
      %973 = vadd.xlane.f32.xlu0 %v970
      %v974 = vpop.xlane.xlu0 %973
      %v975 = vrcp.pop 128.0
      %v976 = vmul.f32 %v974, %v975
      %v977 = vsub.f32 %v970, %v976
      %v978 = vmul.f32 %v977, %v977
      %979 = vadd.xlane.f32.xlu0 %v978
      %v980 = vpop.xlane.xlu0 %979
      %v981 = vmul.f32 %v980, %v975
      %v982 = vadd.f32 %v981, 1e-12
      %v983 = vrsqrt.pop %v982
      %v984 = vmul.f32 %v977, %v983
      %v986 = vlaneseq
      %v987 = vshrl.u32 %v986, 7
      %v988 = vsub.s32 0, %v987
      %v989 = vrot.slane %v971, %v988
      %v991 = vmul.f32 %v984, %v989
      %v993 = vlaneseq
      %v994 = vshrl.u32 %v993, 7
      %v995 = vsub.s32 0, %v994
      %v996 = vrot.slane %v972, %v995
      %v998 = vadd.f32 %v991, %v996
      %v999 = vpack.c.bf16 %v998, %v998
      %1000 = vst [vmem:[%s314] sm:$0xf] %v999
      %p1001 = scmp.lt.s32.totalorder %s19, 1
      %s1002 = scalar_select %p1001, %s19, 1
      %s1003 = smul.addr %s1002, 4
      %s1004 = scalar_lea.vmem %s8, %s1003
      // Predicated region
      $region53: #{bert_encode.7} parent=51 // pred_check
        %p1005 = pneg %p215
      $region54: #{bert_encode.7} parent=51 // pred_check_branch
        %1007 = sbr.rel (%p1005) target = $region56
      $region55: #{bert_encode.7} parent=51 // pred_region
        _
      $region56: #{bert_encode.7} parent=51 // pred_fallthru
        _
    $region52: #{bert_encode.7} parent=5 // pred_fallthru
      _
    %p1008 = scmp.le.s32.totalorder 2, %s14
    // Predicated region
    $region57: #{bert_encode.7} parent=5 // pred_check
      %p1009 = pneg %p1008
    $region58: #{bert_encode.7} parent=5 // pred_check_branch
      %1011 = sbr.rel (%p1009) target = $region60
    $region59: #{bert_encode.7} parent=5 // pred_region
      %s1012 = ssub.s32 %s14, 2
      // Predicated region
      $region61: #{bert_encode.7} parent=59 // pred_check
        %p1013 = pneg %p221
      $region62: #{bert_encode.7} parent=59 // pred_check_branch
        %1015 = sbr.rel (%p1013) target = $region64
      $region63: #{bert_encode.7} parent=59 // pred_region
        %p1016 = scmp.lt.s32.totalorder %s20, 1
        %s1017 = scalar_select %p1016, %s20, 1
        %s1018 = smul.addr %s1017, 4
        %s1019 = scalar_lea.vmem %s8, %s1018
      $region64: #{bert_encode.7} parent=59 // pred_fallthru
        _
    $region60: #{bert_encode.7} parent=5 // pred_fallthru
      _
  $region6: #{bert_encode.7} parent=0 // loop_footer
    %s18 = sadd.s32 1, %s14
  $region7: #{bert_encode.7} parent=0 // loop_footer_branch
    %13 = sbr.rel target = $region3
  $region8: #{bert_encode.7} parent=0 // loop_exit
    _

</llo_original>
